<compile_context>
chip_gen: v5e
topology: v5e:2x2
jax: 0.10.0
libtpu: 0.0.40
codegen_flags: <defaults>
</compile_context>

<pallas_src>
import functools

import jax
import jax.numpy as jnp
from jax import lax
from jax.experimental import pallas as pl
from jax.experimental.pallas import tpu as pltpu


def attention_kernel(xq_ref, k_ref, v_ref, wq_ref, wout_ref, bias_ref,
                     o_ref, pv_ref, *, heads, dim_head):
    # Q projection for this query tile (softmax scale pre-folded into wq).
    q = jnp.dot(xq_ref[0], wq_ref[...],
                preferred_element_type=jnp.float32).astype(jnp.bfloat16)      # (TQ, inner)

    # Per-head attention. Each head's PV lands in its column slice of the (TQ, inner)
    # bf16 scratch, so the only cross-head state is that scratch; s / e / p / pv die
    # per head (small live set, no spilled f32 accumulator).
    for h in range(heads):
        lo, hi = h * dim_head, (h + 1) * dim_head
        q_h = q[:, lo:hi]                                                     # (TQ, dh) bf16
        k_h = k_ref[0, :, lo:hi]                                              # (L,  dh) bf16
        v_h = v_ref[0, :, lo:hi]                                              # (L,  dh) bf16

        # q k^T without an explicit transpose: contract the last dims on the MXU.
        s = lax.dot_general(q_h, k_h,
                            dimension_numbers=(((1,), (1,)), ((), ())),
                            preferred_element_type=jnp.float32)               # (TQ, L) f32
        # numerically stable softmax (f32); reciprocal on the EUP slot.
        m = jnp.max(s, axis=-1, keepdims=True)
        e = jnp.exp(s - m)
        p = e * pl.reciprocal(jnp.sum(e, axis=-1, keepdims=True), approx=True)

        pv = jnp.dot(p.astype(jnp.bfloat16), v_h,
                     preferred_element_type=jnp.float32)                      # (TQ, dh) f32
        pv_ref[:, lo:hi] = pv.astype(jnp.bfloat16)

    # Single full-depth (K = inner) output projection; bias folded into this epilogue.
    out = jnp.dot(pv_ref[...], wout_ref[...],
                  preferred_element_type=jnp.float32)                         # (TQ, D) f32
    o_ref[0] = (out + bias_ref[...]).astype(o_ref.dtype)


def _vmem_bytes(tq, L, D, inner, out_bytes):
    """Rough per-grid-step VMEM estimate (bytes)."""
    kv_in = 2 * (2 * L * inner * 2)            # K and V blocks, double-buffered, bf16
    xq_in = 2 * tq * D * 2                     # x query tile, double-buffered, bf16
    weights = 2 * D * inner * 2 + 8 * 128 * 4  # W_q + W_out single-buffered + padded bias
    out = 2 * tq * D * out_bytes               # output tile, double-buffered
    pv = tq * inner * 2                        # PV scratch, bf16
    softmax = 3 * tq * L * 4                   # s / e / p f32 intermediates (one head live)
    return kv_in + xq_in + weights + out + pv + softmax + (1 << 20)


def attention(x, w_qkv, w_out, b_out, *, heads, dim_head, q_tile=None):
    B, L, D = x.shape
    inner = heads * dim_head
    scale = dim_head ** (-0.5)

    # Trace-time weight prep: fold softmax scale into Q columns, cast MXU operands to bf16.
    w_q = (w_qkv[:, :inner] * scale).astype(jnp.bfloat16)            # (D, inner)
    w_k = w_qkv[:, inner:2 * inner].astype(jnp.bfloat16)             # (D, inner)
    w_v = w_qkv[:, 2 * inner:].astype(jnp.bfloat16)                  # (D, inner)
    w_out_b = w_out.astype(jnp.bfloat16)                             # (inner, D), natural layout
    bias = b_out.reshape(1, D).astype(jnp.float32)
    x_bf16 = x.astype(jnp.bfloat16)

    # K/V projection as plain XLA matmuls (near-roofline already); keeps the grid free of
    # cross-q-tile dependences so both axes can be "parallel" on v7x's 2 TensorCores.
    k = jnp.dot(x_bf16, w_k, preferred_element_type=jnp.float32).astype(jnp.bfloat16)  # (B,L,inner)
    v = jnp.dot(x_bf16, w_v, preferred_element_type=jnp.float32).astype(jnp.bfloat16)  # (B,L,inner)

    out_bytes = jnp.dtype(x.dtype).itemsize

    # Query-tile size: multiples of the bf16 sublane tile (16) or the full sequence,
    # capped by a VMEM budget that stays inside v7x's 64 MiB physical VMEM.
    # (v5e, with 128 MiB VMEM, can pass q_tile=256 when L permits.)
    vmem_target = 48 << 20
    candidates = []
    if q_tile is not None and L % q_tile == 0 and (q_tile % 16 == 0 or q_tile == L):
        candidates.append(q_tile)
    candidates += [c for c in (128, 64, 32, 16) if L % c == 0]
    candidates.append(L)
    tq = candidates[-1]
    for cand in candidates:
        if _vmem_bytes(cand, L, D, inner, out_bytes) <= vmem_target:
            tq = cand
            break
    n_q = L // tq

    vmem_limit = int(min(56 << 20,
                         max(32 << 20, 2 * _vmem_bytes(tq, L, D, inner, out_bytes))))

    kernel = functools.partial(attention_kernel, heads=heads, dim_head=dim_head)

    # Weights / bias never change across the grid: single-buffer them (halves their VMEM).
    const_buf = pl.Buffered(1)

    return pl.pallas_call(
        kernel,
        out_shape=jax.ShapeDtypeStruct((B, L, D), x.dtype),
        grid_spec=pltpu.PrefetchScalarGridSpec(
            num_scalar_prefetch=0,
            grid=(B, n_q),
            in_specs=[
                pl.BlockSpec((1, tq, D), lambda b, qi: (b, qi, 0)),        # x query tile
                pl.BlockSpec((1, L, inner), lambda b, qi: (b, 0, 0)),      # K row (re-DMA'd per b only)
                pl.BlockSpec((1, L, inner), lambda b, qi: (b, 0, 0)),      # V row
                pl.BlockSpec((D, inner), lambda b, qi: (0, 0),
                             pipeline_mode=const_buf),                     # W_q (pre-scaled)
                pl.BlockSpec((inner, D), lambda b, qi: (0, 0),
                             pipeline_mode=const_buf),                     # W_out
                pl.BlockSpec((1, D), lambda b, qi: (0, 0),
                             pipeline_mode=const_buf),                     # bias
            ],
            out_specs=pl.BlockSpec((1, tq, D), lambda b, qi: (b, qi, 0)),
            scratch_shapes=[pltpu.VMEM((tq, inner), jnp.bfloat16)],        # per-tile PV slab
        ),
        compiler_params=pltpu.CompilerParams(
            dimension_semantics=("parallel", "parallel"),
            vmem_limit_bytes=vmem_limit),
    )(x_bf16, k, v, w_q, w_out_b, bias)


def attention_ref(x, w_qkv, w_out, b_out, *, heads, dim_head):
    """Pure-JAX f32 reference mirroring the PyTorch forward."""
    B, L, D = x.shape
    inner = heads * dim_head
    scale = dim_head ** (-0.5)
    qkv = x @ w_qkv
    qkv = qkv.reshape(B, L, 3, heads, dim_head).transpose(2, 0, 3, 1, 4)  # (3,B,H,L,dh)
    q, k, v = qkv[0], qkv[1], qkv[2]
    dots = jnp.einsum("bhld,bhmd->bhlm", q, k) * scale
    attn = jax.nn.softmax(dots, axis=-1)
    out = jnp.einsum("bhlm,bhmd->bhld", attn, v)
    out = out.transpose(0, 2, 1, 3).reshape(B, L, inner)
    return out @ w_out + b_out.reshape(1, 1, D)


if __name__ == "__main__":
    def run_case(B, L, D, heads, dim_head, q_tile):
        inner = heads * dim_head
        key = jax.random.PRNGKey(0)
        kx, kq, kw, kb = jax.random.split(key, 4)
        x = jax.random.normal(kx, (B, L, D), dtype=jnp.float32)
        w_qkv = 0.05 * jax.random.normal(kq, (D, 3 * inner), dtype=jnp.float32)
        w_out = 0.05 * jax.random.normal(kw, (inner, D), dtype=jnp.float32)
        b_out = 0.05 * jax.random.normal(kb, (1, D), dtype=jnp.float32)

        y = attention(x, w_qkv, w_out, b_out,
                      heads=heads, dim_head=dim_head, q_tile=q_tile)
        y = jax.block_until_ready(y)
        y_ref = attention_ref(x, w_qkv, w_out, b_out, heads=heads, dim_head=dim_head)
        assert y.shape == (B, L, D)
        assert jnp.allclose(y, y_ref, atol=2e-2, rtol=2e-2), (
            f"mismatch vs reference, max abs err = {jnp.max(jnp.abs(y - y_ref))}")

    # Small shapes consistent with the module defaults (single q tile).
    run_case(B=2, L=8, D=32, heads=8, dim_head=64, q_tile=None)
    # Exercise the multi-q-tile path (both grid axes parallel, K/V DMA'd once per batch row).
    run_case(B=2, L=32, D=32, heads=4, dim_head=64, q_tile=16)

    print("KERNEL_OK")
</pallas_src>

<mosaic_0001>
module attributes {stable_mosaic.version = 11 : i64} {
  func.func @attention_kernel(%arg0: i32, %arg1: i32, %arg2: memref<1x8x32xbf16, #tpu.memory_space<vmem>>, %arg3: memref<1x8x512xbf16, #tpu.memory_space<vmem>>, %arg4: memref<1x8x512xbf16, #tpu.memory_space<vmem>>, %arg5: memref<32x512xbf16, #tpu.memory_space<vmem>>, %arg6: memref<512x32xbf16, #tpu.memory_space<vmem>>, %arg7: memref<1x32xf32, #tpu.memory_space<vmem>>, %arg8: memref<1x8x32xf32, #tpu.memory_space<vmem>>, %arg9: memref<8x512xbf16, #tpu.memory_space<vmem>>) attributes {dimension_semantics = [#tpu.dimension_semantics<parallel>, #tpu.dimension_semantics<parallel>], iteration_bounds = array<i64: 2, 1>, scalar_prefetch = 0 : i64, scratch_operands = 1 : i64, tpu.core_type = #tpu.core_type<tc>, window_params = [{transform_indices = @transform_0, window_bounds = array<i64: 1, 8, 32>}, {transform_indices = @transform_1, window_bounds = array<i64: 1, 8, 512>}, {transform_indices = @transform_2, window_bounds = array<i64: 1, 8, 512>}, {pipeline_mode = #tpu.pipeline_mode<synchronous>, transform_indices = @transform_3, window_bounds = array<i64: 32, 512>}, {pipeline_mode = #tpu.pipeline_mode<synchronous>, transform_indices = @transform_4, window_bounds = array<i64: 512, 32>}, {pipeline_mode = #tpu.pipeline_mode<synchronous>, transform_indices = @transform_5, window_bounds = array<i64: 1, 32>}, {transform_indices = @transform_6, window_bounds = array<i64: 1, 8, 32>}]} {
    %c0 = arith.constant 0 : index
    %c0_0 = arith.constant 0 : index
    %c0_1 = arith.constant 0 : index
    %0 = vector.load %arg2[%c0, %c0_0, %c0_1] : memref<1x8x32xbf16, #tpu.memory_space<vmem>>, vector<1x8x32xbf16>
    %1 = vector.shape_cast %0 : vector<1x8x32xbf16> to vector<8x32xbf16>
    %c0_2 = arith.constant 0 : index
    %c0_3 = arith.constant 0 : index
    %2 = vector.load %arg5[%c0_2, %c0_3] : memref<32x512xbf16, #tpu.memory_space<vmem>>, vector<32x512xbf16>
    %cst = arith.constant dense<0.000000e+00> : vector<8x512xf32>
    %3 = tpu.matmul %1, %2, %cst {dimension_numbers = #tpu.dot_dimension_numbers<[1], [0], [0], [1], [0, 0, 1, 1], [], []>} : vector<8x32xbf16>, vector<32x512xbf16>, vector<8x512xf32> -> vector<8x512xf32>
    %4 = arith.truncf %3 : vector<8x512xf32> to vector<8x512xbf16>
    %5 = vector.extract_strided_slice %4 {offsets = [0, 0], sizes = [8, 64], strides = [1, 1]} : vector<8x512xbf16> to vector<8x64xbf16>
    %c0_4 = arith.constant 0 : index
    %c0_5 = arith.constant 0 : index
    %c0_6 = arith.constant 0 : index
    %6 = vector.load %arg3[%c0_4, %c0_5, %c0_6] : memref<1x8x512xbf16, #tpu.memory_space<vmem>>, vector<1x8x64xbf16>
    %7 = vector.shape_cast %6 : vector<1x8x64xbf16> to vector<8x64xbf16>
    %c0_7 = arith.constant 0 : index
    %c0_8 = arith.constant 0 : index
    %c0_9 = arith.constant 0 : index
    %8 = vector.load %arg4[%c0_7, %c0_8, %c0_9] : memref<1x8x512xbf16, #tpu.memory_space<vmem>>, vector<1x8x64xbf16>
    %9 = vector.shape_cast %8 : vector<1x8x64xbf16> to vector<8x64xbf16>
    %cst_10 = arith.constant dense<0.000000e+00> : vector<8x8xf32>
    %10 = tpu.matmul %5, %7, %cst_10 {dimension_numbers = #tpu.dot_dimension_numbers<[1], [1], [0], [0], [0, 0, 1, 0], [], []>} : vector<8x64xbf16>, vector<8x64xbf16>, vector<8x8xf32> -> vector<8x8xf32>
    %cst_11 = arith.constant dense<0xFF800000> : vector<8xf32>
    %11 = vector.multi_reduction <maximumf>, %10, %cst_11 [1] : vector<8x8xf32> to vector<8xf32>
    %12 = vector.shape_cast %11 : vector<8xf32> to vector<8x1xf32>
    %13 = vector.broadcast %12 : vector<8x1xf32> to vector<8x8xf32>
    %14 = arith.subf %10, %13 : vector<8x8xf32>
    %15 = math.exp %14 : vector<8x8xf32>
    %cst_12 = arith.constant dense<0.000000e+00> : vector<8xf32>
    %16 = vector.multi_reduction <add>, %15, %cst_12 [1] : vector<8x8xf32> to vector<8xf32>
    %17 = vector.shape_cast %16 : vector<8xf32> to vector<8x1xf32>
    %18 = tpu.reciprocal %17 {approx = true} : vector<8x1xf32> -> vector<8x1xf32>
    %19 = vector.broadcast %18 : vector<8x1xf32> to vector<8x8xf32>
    %20 = arith.mulf %15, %19 : vector<8x8xf32>
    %21 = arith.truncf %20 : vector<8x8xf32> to vector<8x8xbf16>
    %cst_13 = arith.constant dense<0.000000e+00> : vector<8x64xf32>
    %22 = tpu.matmul %21, %9, %cst_13 {dimension_numbers = #tpu.dot_dimension_numbers<[1], [0], [0], [1], [0, 0, 1, 1], [], []>} : vector<8x8xbf16>, vector<8x64xbf16>, vector<8x64xf32> -> vector<8x64xf32>
    %23 = arith.truncf %22 : vector<8x64xf32> to vector<8x64xbf16>
    %c0_14 = arith.constant 0 : index
    %c0_15 = arith.constant 0 : index
    %24 = vector.load %arg9[%c0_14, %c0_15] : memref<8x512xbf16, #tpu.memory_space<vmem>>, vector<8x64xbf16>
    tpu.vector_store %arg9[%c0_14, %c0_15], %23 {strides = array<i32>} : memref<8x512xbf16, #tpu.memory_space<vmem>>, vector<8x64xbf16>,
    %25 = vector.extract_strided_slice %4 {offsets = [0, 64], sizes = [8, 64], strides = [1, 1]} : vector<8x512xbf16> to vector<8x64xbf16>
    %c0_16 = arith.constant 0 : index
    %c0_17 = arith.constant 0 : index
    %c64 = arith.constant 64 : index
    %26 = vector.load %arg3[%c0_16, %c0_17, %c64] : memref<1x8x512xbf16, #tpu.memory_space<vmem>>, vector<1x8x64xbf16>
    %27 = vector.shape_cast %26 : vector<1x8x64xbf16> to vector<8x64xbf16>
    %c0_18 = arith.constant 0 : index
    %c0_19 = arith.constant 0 : index
    %c64_20 = arith.constant 64 : index
    %28 = vector.load %arg4[%c0_18, %c0_19, %c64_20] : memref<1x8x512xbf16, #tpu.memory_space<vmem>>, vector<1x8x64xbf16>
    %29 = vector.shape_cast %28 : vector<1x8x64xbf16> to vector<8x64xbf16>
    %cst_21 = arith.constant dense<0.000000e+00> : vector<8x8xf32>
    %30 = tpu.matmul %25, %27, %cst_21 {dimension_numbers = #tpu.dot_dimension_numbers<[1], [1], [0], [0], [0, 0, 1, 0], [], []>} : vector<8x64xbf16>, vector<8x64xbf16>, vector<8x8xf32> -> vector<8x8xf32>
    %cst_22 = arith.constant dense<0xFF800000> : vector<8xf32>
    %31 = vector.multi_reduction <maximumf>, %30, %cst_22 [1] : vector<8x8xf32> to vector<8xf32>
    %32 = vector.shape_cast %31 : vector<8xf32> to vector<8x1xf32>
    %33 = vector.broadcast %32 : vector<8x1xf32> to vector<8x8xf32>
    %34 = arith.subf %30, %33 : vector<8x8xf32>
    %35 = math.exp %34 : vector<8x8xf32>
    %cst_23 = arith.constant dense<0.000000e+00> : vector<8xf32>
    %36 = vector.multi_reduction <add>, %35, %cst_23 [1] : vector<8x8xf32> to vector<8xf32>
    %37 = vector.shape_cast %36 : vector<8xf32> to vector<8x1xf32>
    %38 = tpu.reciprocal %37 {approx = true} : vector<8x1xf32> -> vector<8x1xf32>
    %39 = vector.broadcast %38 : vector<8x1xf32> to vector<8x8xf32>
    %40 = arith.mulf %35, %39 : vector<8x8xf32>
    %41 = arith.truncf %40 : vector<8x8xf32> to vector<8x8xbf16>
    %cst_24 = arith.constant dense<0.000000e+00> : vector<8x64xf32>
    %42 = tpu.matmul %41, %29, %cst_24 {dimension_numbers = #tpu.dot_dimension_numbers<[1], [0], [0], [1], [0, 0, 1, 1], [], []>} : vector<8x8xbf16>, vector<8x64xbf16>, vector<8x64xf32> -> vector<8x64xf32>
    %43 = arith.truncf %42 : vector<8x64xf32> to vector<8x64xbf16>
    %c0_25 = arith.constant 0 : index
    %c64_26 = arith.constant 64 : index
    %44 = vector.load %arg9[%c0_25, %c64_26] : memref<8x512xbf16, #tpu.memory_space<vmem>>, vector<8x64xbf16>
    tpu.vector_store %arg9[%c0_25, %c64_26], %43 {strides = array<i32>} : memref<8x512xbf16, #tpu.memory_space<vmem>>, vector<8x64xbf16>,
    %45 = vector.extract_strided_slice %4 {offsets = [0, 128], sizes = [8, 64], strides = [1, 1]} : vector<8x512xbf16> to vector<8x64xbf16>
    %c0_27 = arith.constant 0 : index
    %c0_28 = arith.constant 0 : index
    %c128 = arith.constant 128 : index
    %46 = vector.load %arg3[%c0_27, %c0_28, %c128] : memref<1x8x512xbf16, #tpu.memory_space<vmem>>, vector<1x8x64xbf16>
    %47 = vector.shape_cast %46 : vector<1x8x64xbf16> to vector<8x64xbf16>
    %c0_29 = arith.constant 0 : index
    %c0_30 = arith.constant 0 : index
    %c128_31 = arith.constant 128 : index
    %48 = vector.load %arg4[%c0_29, %c0_30, %c128_31] : memref<1x8x512xbf16, #tpu.memory_space<vmem>>, vector<1x8x64xbf16>
    %49 = vector.shape_cast %48 : vector<1x8x64xbf16> to vector<8x64xbf16>
    %cst_32 = arith.constant dense<0.000000e+00> : vector<8x8xf32>
    %50 = tpu.matmul %45, %47, %cst_32 {dimension_numbers = #tpu.dot_dimension_numbers<[1], [1], [0], [0], [0, 0, 1, 0], [], []>} : vector<8x64xbf16>, vector<8x64xbf16>, vector<8x8xf32> -> vector<8x8xf32>
    %cst_33 = arith.constant dense<0xFF800000> : vector<8xf32>
    %51 = vector.multi_reduction <maximumf>, %50, %cst_33 [1] : vector<8x8xf32> to vector<8xf32>
    %52 = vector.shape_cast %51 : vector<8xf32> to vector<8x1xf32>
    %53 = vector.broadcast %52 : vector<8x1xf32> to vector<8x8xf32>
    %54 = arith.subf %50, %53 : vector<8x8xf32>
    %55 = math.exp %54 : vector<8x8xf32>
    %cst_34 = arith.constant dense<0.000000e+00> : vector<8xf32>
    %56 = vector.multi_reduction <add>, %55, %cst_34 [1] : vector<8x8xf32> to vector<8xf32>
    %57 = vector.shape_cast %56 : vector<8xf32> to vector<8x1xf32>
    %58 = tpu.reciprocal %57 {approx = true} : vector<8x1xf32> -> vector<8x1xf32>
    %59 = vector.broadcast %58 : vector<8x1xf32> to vector<8x8xf32>
    %60 = arith.mulf %55, %59 : vector<8x8xf32>
    %61 = arith.truncf %60 : vector<8x8xf32> to vector<8x8xbf16>
    %cst_35 = arith.constant dense<0.000000e+00> : vector<8x64xf32>
    %62 = tpu.matmul %61, %49, %cst_35 {dimension_numbers = #tpu.dot_dimension_numbers<[1], [0], [0], [1], [0, 0, 1, 1], [], []>} : vector<8x8xbf16>, vector<8x64xbf16>, vector<8x64xf32> -> vector<8x64xf32>
    %63 = arith.truncf %62 : vector<8x64xf32> to vector<8x64xbf16>
    %c0_36 = arith.constant 0 : index
    %c128_37 = arith.constant 128 : index
    %64 = vector.load %arg9[%c0_36, %c128_37] : memref<8x512xbf16, #tpu.memory_space<vmem>>, vector<8x64xbf16>
    tpu.vector_store %arg9[%c0_36, %c128_37], %63 {strides = array<i32>} : memref<8x512xbf16, #tpu.memory_space<vmem>>, vector<8x64xbf16>,
    %65 = vector.extract_strided_slice %4 {offsets = [0, 192], sizes = [8, 64], strides = [1, 1]} : vector<8x512xbf16> to vector<8x64xbf16>
    %c0_38 = arith.constant 0 : index
    %c0_39 = arith.constant 0 : index
    %c192 = arith.constant 192 : index
    %66 = vector.load %arg3[%c0_38, %c0_39, %c192] : memref<1x8x512xbf16, #tpu.memory_space<vmem>>, vector<1x8x64xbf16>
    %67 = vector.shape_cast %66 : vector<1x8x64xbf16> to vector<8x64xbf16>
    %c0_40 = arith.constant 0 : index
    %c0_41 = arith.constant 0 : index
    %c192_42 = arith.constant 192 : index
    %68 = vector.load %arg4[%c0_40, %c0_41, %c192_42] : memref<1x8x512xbf16, #tpu.memory_space<vmem>>, vector<1x8x64xbf16>
    %69 = vector.shape_cast %68 : vector<1x8x64xbf16> to vector<8x64xbf16>
    %cst_43 = arith.constant dense<0.000000e+00> : vector<8x8xf32>
    %70 = tpu.matmul %65, %67, %cst_43 {dimension_numbers = #tpu.dot_dimension_numbers<[1], [1], [0], [0], [0, 0, 1, 0], [], []>} : vector<8x64xbf16>, vector<8x64xbf16>, vector<8x8xf32> -> vector<8x8xf32>
    %cst_44 = arith.constant dense<0xFF800000> : vector<8xf32>
    %71 = vector.multi_reduction <maximumf>, %70, %cst_44 [1] : vector<8x8xf32> to vector<8xf32>
    %72 = vector.shape_cast %71 : vector<8xf32> to vector<8x1xf32>
    %73 = vector.broadcast %72 : vector<8x1xf32> to vector<8x8xf32>
    %74 = arith.subf %70, %73 : vector<8x8xf32>
    %75 = math.exp %74 : vector<8x8xf32>
    %cst_45 = arith.constant dense<0.000000e+00> : vector<8xf32>
    %76 = vector.multi_reduction <add>, %75, %cst_45 [1] : vector<8x8xf32> to vector<8xf32>
    %77 = vector.shape_cast %76 : vector<8xf32> to vector<8x1xf32>
    %78 = tpu.reciprocal %77 {approx = true} : vector<8x1xf32> -> vector<8x1xf32>
    %79 = vector.broadcast %78 : vector<8x1xf32> to vector<8x8xf32>
    %80 = arith.mulf %75, %79 : vector<8x8xf32>
    %81 = arith.truncf %80 : vector<8x8xf32> to vector<8x8xbf16>
    %cst_46 = arith.constant dense<0.000000e+00> : vector<8x64xf32>
    %82 = tpu.matmul %81, %69, %cst_46 {dimension_numbers = #tpu.dot_dimension_numbers<[1], [0], [0], [1], [0, 0, 1, 1], [], []>} : vector<8x8xbf16>, vector<8x64xbf16>, vector<8x64xf32> -> vector<8x64xf32>
    %83 = arith.truncf %82 : vector<8x64xf32> to vector<8x64xbf16>
    %c0_47 = arith.constant 0 : index
    %c192_48 = arith.constant 192 : index
    %84 = vector.load %arg9[%c0_47, %c192_48] : memref<8x512xbf16, #tpu.memory_space<vmem>>, vector<8x64xbf16>
    tpu.vector_store %arg9[%c0_47, %c192_48], %83 {strides = array<i32>} : memref<8x512xbf16, #tpu.memory_space<vmem>>, vector<8x64xbf16>,
    %85 = vector.extract_strided_slice %4 {offsets = [0, 256], sizes = [8, 64], strides = [1, 1]} : vector<8x512xbf16> to vector<8x64xbf16>
    %c0_49 = arith.constant 0 : index
    %c0_50 = arith.constant 0 : index
    %c256 = arith.constant 256 : index
    %86 = vector.load %arg3[%c0_49, %c0_50, %c256] : memref<1x8x512xbf16, #tpu.memory_space<vmem>>, vector<1x8x64xbf16>
    %87 = vector.shape_cast %86 : vector<1x8x64xbf16> to vector<8x64xbf16>
    %c0_51 = arith.constant 0 : index
    %c0_52 = arith.constant 0 : index
    %c256_53 = arith.constant 256 : index
    %88 = vector.load %arg4[%c0_51, %c0_52, %c256_53] : memref<1x8x512xbf16, #tpu.memory_space<vmem>>, vector<1x8x64xbf16>
    %89 = vector.shape_cast %88 : vector<1x8x64xbf16> to vector<8x64xbf16>
    %cst_54 = arith.constant dense<0.000000e+00> : vector<8x8xf32>
    %90 = tpu.matmul %85, %87, %cst_54 {dimension_numbers = #tpu.dot_dimension_numbers<[1], [1], [0], [0], [0, 0, 1, 0], [], []>} : vector<8x64xbf16>, vector<8x64xbf16>, vector<8x8xf32> -> vector<8x8xf32>
    %cst_55 = arith.constant dense<0xFF800000> : vector<8xf32>
    %91 = vector.multi_reduction <maximumf>, %90, %cst_55 [1] : vector<8x8xf32> to vector<8xf32>
    %92 = vector.shape_cast %91 : vector<8xf32> to vector<8x1xf32>
    %93 = vector.broadcast %92 : vector<8x1xf32> to vector<8x8xf32>
    %94 = arith.subf %90, %93 : vector<8x8xf32>
    %95 = math.exp %94 : vector<8x8xf32>
    %cst_56 = arith.constant dense<0.000000e+00> : vector<8xf32>
    %96 = vector.multi_reduction <add>, %95, %cst_56 [1] : vector<8x8xf32> to vector<8xf32>
    %97 = vector.shape_cast %96 : vector<8xf32> to vector<8x1xf32>
    %98 = tpu.reciprocal %97 {approx = true} : vector<8x1xf32> -> vector<8x1xf32>
    %99 = vector.broadcast %98 : vector<8x1xf32> to vector<8x8xf32>
    %100 = arith.mulf %95, %99 : vector<8x8xf32>
    %101 = arith.truncf %100 : vector<8x8xf32> to vector<8x8xbf16>
    %cst_57 = arith.constant dense<0.000000e+00> : vector<8x64xf32>
    %102 = tpu.matmul %101, %89, %cst_57 {dimension_numbers = #tpu.dot_dimension_numbers<[1], [0], [0], [1], [0, 0, 1, 1], [], []>} : vector<8x8xbf16>, vector<8x64xbf16>, vector<8x64xf32> -> vector<8x64xf32>
    %103 = arith.truncf %102 : vector<8x64xf32> to vector<8x64xbf16>
    %c0_58 = arith.constant 0 : index
    %c256_59 = arith.constant 256 : index
    %104 = vector.load %arg9[%c0_58, %c256_59] : memref<8x512xbf16, #tpu.memory_space<vmem>>, vector<8x64xbf16>
    tpu.vector_store %arg9[%c0_58, %c256_59], %103 {strides = array<i32>} : memref<8x512xbf16, #tpu.memory_space<vmem>>, vector<8x64xbf16>,
    %105 = vector.extract_strided_slice %4 {offsets = [0, 320], sizes = [8, 64], strides = [1, 1]} : vector<8x512xbf16> to vector<8x64xbf16>
    %c0_60 = arith.constant 0 : index
    %c0_61 = arith.constant 0 : index
    %c320 = arith.constant 320 : index
    %106 = vector.load %arg3[%c0_60, %c0_61, %c320] : memref<1x8x512xbf16, #tpu.memory_space<vmem>>, vector<1x8x64xbf16>
    %107 = vector.shape_cast %106 : vector<1x8x64xbf16> to vector<8x64xbf16>
    %c0_62 = arith.constant 0 : index
    %c0_63 = arith.constant 0 : index
    %c320_64 = arith.constant 320 : index
    %108 = vector.load %arg4[%c0_62, %c0_63, %c320_64] : memref<1x8x512xbf16, #tpu.memory_space<vmem>>, vector<1x8x64xbf16>
    %109 = vector.shape_cast %108 : vector<1x8x64xbf16> to vector<8x64xbf16>
    %cst_65 = arith.constant dense<0.000000e+00> : vector<8x8xf32>
    %110 = tpu.matmul %105, %107, %cst_65 {dimension_numbers = #tpu.dot_dimension_numbers<[1], [1], [0], [0], [0, 0, 1, 0], [], []>} : vector<8x64xbf16>, vector<8x64xbf16>, vector<8x8xf32> -> vector<8x8xf32>
    %cst_66 = arith.constant dense<0xFF800000> : vector<8xf32>
    %111 = vector.multi_reduction <maximumf>, %110, %cst_66 [1] : vector<8x8xf32> to vector<8xf32>
    %112 = vector.shape_cast %111 : vector<8xf32> to vector<8x1xf32>
    %113 = vector.broadcast %112 : vector<8x1xf32> to vector<8x8xf32>
    %114 = arith.subf %110, %113 : vector<8x8xf32>
    %115 = math.exp %114 : vector<8x8xf32>
    %cst_67 = arith.constant dense<0.000000e+00> : vector<8xf32>
    %116 = vector.multi_reduction <add>, %115, %cst_67 [1] : vector<8x8xf32> to vector<8xf32>
    %117 = vector.shape_cast %116 : vector<8xf32> to vector<8x1xf32>
    %118 = tpu.reciprocal %117 {approx = true} : vector<8x1xf32> -> vector<8x1xf32>
    %119 = vector.broadcast %118 : vector<8x1xf32> to vector<8x8xf32>
    %120 = arith.mulf %115, %119 : vector<8x8xf32>
    %121 = arith.truncf %120 : vector<8x8xf32> to vector<8x8xbf16>
    %cst_68 = arith.constant dense<0.000000e+00> : vector<8x64xf32>
    %122 = tpu.matmul %121, %109, %cst_68 {dimension_numbers = #tpu.dot_dimension_numbers<[1], [0], [0], [1], [0, 0, 1, 1], [], []>} : vector<8x8xbf16>, vector<8x64xbf16>, vector<8x64xf32> -> vector<8x64xf32>
    %123 = arith.truncf %122 : vector<8x64xf32> to vector<8x64xbf16>
    %c0_69 = arith.constant 0 : index
    %c320_70 = arith.constant 320 : index
    %124 = vector.load %arg9[%c0_69, %c320_70] : memref<8x512xbf16, #tpu.memory_space<vmem>>, vector<8x64xbf16>
    tpu.vector_store %arg9[%c0_69, %c320_70], %123 {strides = array<i32>} : memref<8x512xbf16, #tpu.memory_space<vmem>>, vector<8x64xbf16>,
    %125 = vector.extract_strided_slice %4 {offsets = [0, 384], sizes = [8, 64], strides = [1, 1]} : vector<8x512xbf16> to vector<8x64xbf16>
    %c0_71 = arith.constant 0 : index
    %c0_72 = arith.constant 0 : index
    %c384 = arith.constant 384 : index
    %126 = vector.load %arg3[%c0_71, %c0_72, %c384] : memref<1x8x512xbf16, #tpu.memory_space<vmem>>, vector<1x8x64xbf16>
    %127 = vector.shape_cast %126 : vector<1x8x64xbf16> to vector<8x64xbf16>
    %c0_73 = arith.constant 0 : index
    %c0_74 = arith.constant 0 : index
    %c384_75 = arith.constant 384 : index
    %128 = vector.load %arg4[%c0_73, %c0_74, %c384_75] : memref<1x8x512xbf16, #tpu.memory_space<vmem>>, vector<1x8x64xbf16>
    %129 = vector.shape_cast %128 : vector<1x8x64xbf16> to vector<8x64xbf16>
    %cst_76 = arith.constant dense<0.000000e+00> : vector<8x8xf32>
    %130 = tpu.matmul %125, %127, %cst_76 {dimension_numbers = #tpu.dot_dimension_numbers<[1], [1], [0], [0], [0, 0, 1, 0], [], []>} : vector<8x64xbf16>, vector<8x64xbf16>, vector<8x8xf32> -> vector<8x8xf32>
    %cst_77 = arith.constant dense<0xFF800000> : vector<8xf32>
    %131 = vector.multi_reduction <maximumf>, %130, %cst_77 [1] : vector<8x8xf32> to vector<8xf32>
    %132 = vector.shape_cast %131 : vector<8xf32> to vector<8x1xf32>
    %133 = vector.broadcast %132 : vector<8x1xf32> to vector<8x8xf32>
    %134 = arith.subf %130, %133 : vector<8x8xf32>
    %135 = math.exp %134 : vector<8x8xf32>
    %cst_78 = arith.constant dense<0.000000e+00> : vector<8xf32>
    %136 = vector.multi_reduction <add>, %135, %cst_78 [1] : vector<8x8xf32> to vector<8xf32>
    %137 = vector.shape_cast %136 : vector<8xf32> to vector<8x1xf32>
    %138 = tpu.reciprocal %137 {approx = true} : vector<8x1xf32> -> vector<8x1xf32>
    %139 = vector.broadcast %138 : vector<8x1xf32> to vector<8x8xf32>
    %140 = arith.mulf %135, %139 : vector<8x8xf32>
    %141 = arith.truncf %140 : vector<8x8xf32> to vector<8x8xbf16>
    %cst_79 = arith.constant dense<0.000000e+00> : vector<8x64xf32>
    %142 = tpu.matmul %141, %129, %cst_79 {dimension_numbers = #tpu.dot_dimension_numbers<[1], [0], [0], [1], [0, 0, 1, 1], [], []>} : vector<8x8xbf16>, vector<8x64xbf16>, vector<8x64xf32> -> vector<8x64xf32>
    %143 = arith.truncf %142 : vector<8x64xf32> to vector<8x64xbf16>
    %c0_80 = arith.constant 0 : index
    %c384_81 = arith.constant 384 : index
    %144 = vector.load %arg9[%c0_80, %c384_81] : memref<8x512xbf16, #tpu.memory_space<vmem>>, vector<8x64xbf16>
    tpu.vector_store %arg9[%c0_80, %c384_81], %143 {strides = array<i32>} : memref<8x512xbf16, #tpu.memory_space<vmem>>, vector<8x64xbf16>,
    %145 = vector.extract_strided_slice %4 {offsets = [0, 448], sizes = [8, 64], strides = [1, 1]} : vector<8x512xbf16> to vector<8x64xbf16>
    %c0_82 = arith.constant 0 : index
    %c0_83 = arith.constant 0 : index
    %c448 = arith.constant 448 : index
    %146 = vector.load %arg3[%c0_82, %c0_83, %c448] : memref<1x8x512xbf16, #tpu.memory_space<vmem>>, vector<1x8x64xbf16>
    %147 = vector.shape_cast %146 : vector<1x8x64xbf16> to vector<8x64xbf16>
    %c0_84 = arith.constant 0 : index
    %c0_85 = arith.constant 0 : index
    %c448_86 = arith.constant 448 : index
    %148 = vector.load %arg4[%c0_84, %c0_85, %c448_86] : memref<1x8x512xbf16, #tpu.memory_space<vmem>>, vector<1x8x64xbf16>
    %149 = vector.shape_cast %148 : vector<1x8x64xbf16> to vector<8x64xbf16>
    %cst_87 = arith.constant dense<0.000000e+00> : vector<8x8xf32>
    %150 = tpu.matmul %145, %147, %cst_87 {dimension_numbers = #tpu.dot_dimension_numbers<[1], [1], [0], [0], [0, 0, 1, 0], [], []>} : vector<8x64xbf16>, vector<8x64xbf16>, vector<8x8xf32> -> vector<8x8xf32>
    %cst_88 = arith.constant dense<0xFF800000> : vector<8xf32>
    %151 = vector.multi_reduction <maximumf>, %150, %cst_88 [1] : vector<8x8xf32> to vector<8xf32>
    %152 = vector.shape_cast %151 : vector<8xf32> to vector<8x1xf32>
    %153 = vector.broadcast %152 : vector<8x1xf32> to vector<8x8xf32>
    %154 = arith.subf %150, %153 : vector<8x8xf32>
    %155 = math.exp %154 : vector<8x8xf32>
    %cst_89 = arith.constant dense<0.000000e+00> : vector<8xf32>
    %156 = vector.multi_reduction <add>, %155, %cst_89 [1] : vector<8x8xf32> to vector<8xf32>
    %157 = vector.shape_cast %156 : vector<8xf32> to vector<8x1xf32>
    %158 = tpu.reciprocal %157 {approx = true} : vector<8x1xf32> -> vector<8x1xf32>
    %159 = vector.broadcast %158 : vector<8x1xf32> to vector<8x8xf32>
    %160 = arith.mulf %155, %159 : vector<8x8xf32>
    %161 = arith.truncf %160 : vector<8x8xf32> to vector<8x8xbf16>
    %cst_90 = arith.constant dense<0.000000e+00> : vector<8x64xf32>
    %162 = tpu.matmul %161, %149, %cst_90 {dimension_numbers = #tpu.dot_dimension_numbers<[1], [0], [0], [1], [0, 0, 1, 1], [], []>} : vector<8x8xbf16>, vector<8x64xbf16>, vector<8x64xf32> -> vector<8x64xf32>
    %163 = arith.truncf %162 : vector<8x64xf32> to vector<8x64xbf16>
    %c0_91 = arith.constant 0 : index
    %c448_92 = arith.constant 448 : index
    %164 = vector.load %arg9[%c0_91, %c448_92] : memref<8x512xbf16, #tpu.memory_space<vmem>>, vector<8x64xbf16>
    tpu.vector_store %arg9[%c0_91, %c448_92], %163 {strides = array<i32>} : memref<8x512xbf16, #tpu.memory_space<vmem>>, vector<8x64xbf16>,
    %c0_93 = arith.constant 0 : index
    %c0_94 = arith.constant 0 : index
    %165 = vector.load %arg9[%c0_93, %c0_94] : memref<8x512xbf16, #tpu.memory_space<vmem>>, vector<8x512xbf16>
    %c0_95 = arith.constant 0 : index
    %c0_96 = arith.constant 0 : index
    %166 = vector.load %arg6[%c0_95, %c0_96] : memref<512x32xbf16, #tpu.memory_space<vmem>>, vector<512x32xbf16>
    %cst_97 = arith.constant dense<0.000000e+00> : vector<8x32xf32>
    %167 = tpu.matmul %165, %166, %cst_97 {dimension_numbers = #tpu.dot_dimension_numbers<[1], [0], [0], [1], [0, 0, 1, 1], [], []>} : vector<8x512xbf16>, vector<512x32xbf16>, vector<8x32xf32> -> vector<8x32xf32>
    %c0_98 = arith.constant 0 : index
    %c0_99 = arith.constant 0 : index
    %168 = vector.load %arg7[%c0_98, %c0_99] : memref<1x32xf32, #tpu.memory_space<vmem>>, vector<1x32xf32>
    %169 = vector.broadcast %168 : vector<1x32xf32> to vector<8x32xf32>
    %170 = arith.addf %167, %169 : vector<8x32xf32>
    %c0_100 = arith.constant 0 : index
    %c0_101 = arith.constant 0 : index
    %c0_102 = arith.constant 0 : index
    %171 = vector.load %arg8[%c0_100, %c0_101, %c0_102] : memref<1x8x32xf32, #tpu.memory_space<vmem>>, vector<1x8x32xf32>
    %172 = vector.shape_cast %171 : vector<1x8x32xf32> to vector<8x32xf32>
    %173 = vector.shape_cast %170 : vector<8x32xf32> to vector<1x8x32xf32>
    tpu.vector_store %arg8[%c0_100, %c0_101, %c0_102], %173 {strides = array<i32>} : memref<1x8x32xf32, #tpu.memory_space<vmem>>, vector<1x8x32xf32>,
    return
  }
  func.func @transform_0(%arg0: i32, %arg1: i32) -> (i32, i32, i32) {
    %c0_i32 = arith.constant 0 : i32
    %c0_i32_0 = arith.constant 0 : i32
    return %arg0, %arg1, %c0_i32 : i32, i32, i32
  }
  func.func @transform_1(%arg0: i32, %arg1: i32) -> (i32, i32, i32) {
    %c0_i32 = arith.constant 0 : i32
    %c0_i32_0 = arith.constant 0 : i32
    %c0_i32_1 = arith.constant 0 : i32
    return %arg0, %c0_i32, %c0_i32_0 : i32, i32, i32
  }
  func.func @transform_2(%arg0: i32, %arg1: i32) -> (i32, i32, i32) {
    %c0_i32 = arith.constant 0 : i32
    %c0_i32_0 = arith.constant 0 : i32
    %c0_i32_1 = arith.constant 0 : i32
    return %arg0, %c0_i32, %c0_i32_0 : i32, i32, i32
  }
  func.func @transform_3(%arg0: i32, %arg1: i32) -> (i32, i32) {
    %c0_i32 = arith.constant 0 : i32
    %c0_i32_0 = arith.constant 0 : i32
    %c0_i32_1 = arith.constant 0 : i32
    return %c0_i32, %c0_i32_0 : i32, i32
  }
  func.func @transform_4(%arg0: i32, %arg1: i32) -> (i32, i32) {
    %c0_i32 = arith.constant 0 : i32
    %c0_i32_0 = arith.constant 0 : i32
    %c0_i32_1 = arith.constant 0 : i32
    return %c0_i32, %c0_i32_0 : i32, i32
  }
  func.func @transform_5(%arg0: i32, %arg1: i32) -> (i32, i32) {
    %c0_i32 = arith.constant 0 : i32
    %c0_i32_0 = arith.constant 0 : i32
    %c0_i32_1 = arith.constant 0 : i32
    return %c0_i32, %c0_i32_0 : i32, i32
  }
  func.func @transform_6(%arg0: i32, %arg1: i32) -> (i32, i32, i32) {
    %c0_i32 = arith.constant 0 : i32
    %c0_i32_0 = arith.constant 0 : i32
    return %arg0, %arg1, %c0_i32 : i32, i32, i32
  }
}

</mosaic_0001>

<llo_original>
// kernel: tpu_custom_call.1
$region0: #{tpu_custom_call.1}
  #allocation0 [shape = 'u32[]', space=smem, size = 0x4, offset = 0x4, fixed_abs, tag = 'smem constant byte address 0x4 - core index']
  #allocation1 [shape = 'u32[72,128]{1,0:T(1,128)}', space=vmem, size = 0x9000, scoped, tag = 'internal scratch']
  #allocation2 [shape = 'bf16[8,512]{1,0:T(8,128)(2,1)}', space=vmem, size = 0x2000, scoped, tag = 'scratch operand']
  %s0 = inlined_call_operand.vmem [shape: bf16[2,8,32], index: 0, kind: input, shape index: {}]
  %s1 = inlined_call_operand.vmem [shape: bf16[2,8,512], index: 1, kind: input, shape index: {}]
  %s2 = inlined_call_operand.vmem [shape: bf16[2,8,512], index: 2, kind: input, shape index: {}]
  %s3 = inlined_call_operand.vmem [shape: bf16[32,512], index: 3, kind: input, shape index: {}]
  %s4 = inlined_call_operand.vmem [shape: bf16[512,32], index: 4, kind: input, shape index: {}]
  %s5 = inlined_call_operand.vmem [shape: f32[1,32], index: 5, kind: input, shape index: {}]
  %s6 = inlined_call_operand.hbm [shape: f32[2,8,32], index: 6, kind: output, shape index: {}]
  %s7 = sld [smem:[#allocation0]]
  $region57: #{tpu_custom_call.1} parent=0
    _
  %s9 = ssub.s32 1, %s7
  %s10 = scalar_select 0, %s9, %s7
  $region1: #{tpu_custom_call.1} parent=0
    #allocation3 [shape = 'u8[8192]{0}', space=vmem, size = 0x2000, scoped, tag = 'output window, operand 0']
    #allocation4 [shape = 's32[2]{0}', space=sflag, size = 0x8, scoped, tag = 'scoped memory for tpu_custom_call.1']
    %11 = vsyncpa [#allocation4], 0
    %s12 = scalar_lea.sflag [#allocation4], 1
    %13 = vsyncpa %s12, 0
    loop: start=0, step=1, limit=4
    $region2: #{tpu_custom_call.1} parent=1 // loop_pre_header
      _
    $region3: #{tpu_custom_call.1} parent=1 // loop_header
      %s15 = sphi 0, %s19
      %p16 = scmp.ge.s32.totalorder %s15, 4
      %s22 = sphi 0, %s34
      %s23 = sphi 0, %s30
      %s24 = sphi 0, %s22
      %s25 = sphi 0, %s23
      %s26 = sphi 0, %s24
      %s27 = sphi 0, %s25
      %s39 = sphi 0, %s41
      %s42 = sphi 0, %s39
      %s43 = sphi 0, %s42
      %s59 = sphi 0, %s43
      %s65 = sphi 0, %s67
      %s68 = sphi 0, %s65
      %s69 = sphi 0, %s68
      %s85 = sphi 0, %s69
      %s91 = sphi 0, %s93
      %s94 = sphi 0, %s91
      %s95 = sphi 0, %s94
      %s111 = sphi 0, %s95
      %s115 = sphi 0, %s115
      %s117 = sphi 0, %s115
      %s118 = sphi 0, %s117
      %s132 = sphi 0, %s118
      %s136 = sphi 0, %s136
      %s138 = sphi 0, %s136
      %s139 = sphi 0, %s138
      %s153 = sphi 0, %s139
      %s157 = sphi 0, %s157
      %s159 = sphi 0, %s157
      %s160 = sphi 0, %s159
      %s174 = sphi 0, %s160
      %s182 = sphi 0, %s184
      %s185 = sphi 0, %s182
      %s186 = sphi 0, %s185
      %s202 = sphi 0, %s186
    $region4: #{tpu_custom_call.1} parent=1 // loop_header_branch
      %18 = sbr.rel (%p16) target = $region8
    $region5: #{tpu_custom_call.1} parent=1 // loop_body
      %s20 = ssub.s32 %s15, 1
      %s21 = ssub.s32 %s15, 2
      %s28 = sadd.s32 1, %s23
      %p29 = scmp.ge.s32.totalorder %s28, 1
      %s30 = scalar_select %p29, 0, %s28
      %s31 = sadd.s32 1, %s22
      %s32 = scalar_select %p29, %s31, %s22
      %p33 = scmp.ge.s32.totalorder %s32, 2
      %s34 = scalar_select %p33, 0, %s32
      %s35 = ssub.s32 %s22, %s34
      %s36 = ssub.s32 %s23, %s30
      %s37 = sor.u32 %s35, %s36
      %p38 = scmp.eq.s32.totalorder %s37, 0
      %s40 = sadd.s32 %s39, 1
      %s41 = scalar_select %p38, %s39, %s40
      %p44 = pneg %p38
      %p45 = scmp.eq.s32.totalorder %s15, 1
      %p46 = por %p44, %p45
      %p47 = scmp.ne.s32.totalorder %s39, %s42
      %p48 = scmp.eq.s32.totalorder %s15, 0
      %p49 = por %p47, %p48
      %p50 = scmp.ne.s32.totalorder %s39, %s42
      %p51 = scmp.eq.s32.totalorder %s20, 1
      %p52 = por %p50, %p51
      %p53 = scmp.ne.s32.totalorder %s42, %s43
      %p54 = scmp.eq.s32.totalorder %s20, 0
      %p55 = por %p53, %p54
      %p56 = scmp.ne.s32.totalorder %s42, %s43
      %p57 = scmp.eq.s32.totalorder %s21, 1
      %p58 = por %p56, %p57
      %p60 = scmp.ne.s32.totalorder %s43, %s59
      %p61 = scmp.eq.s32.totalorder %s21, 0
      %p62 = por %p60, %p61
      %s63 = ssub.s32 %s22, %s34
      %p64 = scmp.eq.s32.totalorder %s63, 0
      %s66 = sadd.s32 %s65, 1
      %s67 = scalar_select %p64, %s65, %s66
      %p70 = pneg %p64
      %p71 = scmp.eq.s32.totalorder %s15, 1
      %p72 = por %p70, %p71
      %p73 = scmp.ne.s32.totalorder %s65, %s68
      %p74 = scmp.eq.s32.totalorder %s15, 0
      %p75 = por %p73, %p74
      %p76 = scmp.ne.s32.totalorder %s65, %s68
      %p77 = scmp.eq.s32.totalorder %s20, 1
      %p78 = por %p76, %p77
      %p79 = scmp.ne.s32.totalorder %s68, %s69
      %p80 = scmp.eq.s32.totalorder %s20, 0
      %p81 = por %p79, %p80
      %p82 = scmp.ne.s32.totalorder %s68, %s69
      %p83 = scmp.eq.s32.totalorder %s21, 1
      %p84 = por %p82, %p83
      %p86 = scmp.ne.s32.totalorder %s69, %s85
      %p87 = scmp.eq.s32.totalorder %s21, 0
      %p88 = por %p86, %p87
      %s89 = ssub.s32 %s22, %s34
      %p90 = scmp.eq.s32.totalorder %s89, 0
      %s92 = sadd.s32 %s91, 1
      %s93 = scalar_select %p90, %s91, %s92
      %p96 = pneg %p90
      %p97 = scmp.eq.s32.totalorder %s15, 1
      %p98 = por %p96, %p97
      %p99 = scmp.ne.s32.totalorder %s91, %s94
      %p100 = scmp.eq.s32.totalorder %s15, 0
      %p101 = por %p99, %p100
      %p102 = scmp.ne.s32.totalorder %s91, %s94
      %p103 = scmp.eq.s32.totalorder %s20, 1
      %p104 = por %p102, %p103
      %p105 = scmp.ne.s32.totalorder %s94, %s95
      %p106 = scmp.eq.s32.totalorder %s20, 0
      %p107 = por %p105, %p106
      %p108 = scmp.ne.s32.totalorder %s94, %s95
      %p109 = scmp.eq.s32.totalorder %s21, 1
      %p110 = por %p108, %p109
      %p112 = scmp.ne.s32.totalorder %s95, %s111
      %p113 = scmp.eq.s32.totalorder %s21, 0
      %p114 = por %p112, %p113
      %s116 = sadd.s32 %s115, 1
      %p119 = scmp.eq.s32.totalorder %s15, 1
      %p120 = scmp.ne.s32.totalorder %s115, %s117
      %p121 = scmp.eq.s32.totalorder %s15, 0
      %p122 = por %p120, %p121
      %p123 = scmp.ne.s32.totalorder %s115, %s117
      %p124 = scmp.eq.s32.totalorder %s20, 1
      %p125 = por %p123, %p124
      %p126 = scmp.ne.s32.totalorder %s117, %s118
      %p127 = scmp.eq.s32.totalorder %s20, 0
      %p128 = por %p126, %p127
      %p129 = scmp.ne.s32.totalorder %s117, %s118
      %p130 = scmp.eq.s32.totalorder %s21, 1
      %p131 = por %p129, %p130
      %p133 = scmp.ne.s32.totalorder %s118, %s132
      %p134 = scmp.eq.s32.totalorder %s21, 0
      %p135 = por %p133, %p134
      %s137 = sadd.s32 %s136, 1
      %p140 = scmp.eq.s32.totalorder %s15, 1
      %p141 = scmp.ne.s32.totalorder %s136, %s138
      %p142 = scmp.eq.s32.totalorder %s15, 0
      %p143 = por %p141, %p142
      %p144 = scmp.ne.s32.totalorder %s136, %s138
      %p145 = scmp.eq.s32.totalorder %s20, 1
      %p146 = por %p144, %p145
      %p147 = scmp.ne.s32.totalorder %s138, %s139
      %p148 = scmp.eq.s32.totalorder %s20, 0
      %p149 = por %p147, %p148
      %p150 = scmp.ne.s32.totalorder %s138, %s139
      %p151 = scmp.eq.s32.totalorder %s21, 1
      %p152 = por %p150, %p151
      %p154 = scmp.ne.s32.totalorder %s139, %s153
      %p155 = scmp.eq.s32.totalorder %s21, 0
      %p156 = por %p154, %p155
      %s158 = sadd.s32 %s157, 1
      %p161 = scmp.eq.s32.totalorder %s15, 1
      %p162 = scmp.ne.s32.totalorder %s157, %s159
      %p163 = scmp.eq.s32.totalorder %s15, 0
      %p164 = por %p162, %p163
      %p165 = scmp.ne.s32.totalorder %s157, %s159
      %p166 = scmp.eq.s32.totalorder %s20, 1
      %p167 = por %p165, %p166
      %p168 = scmp.ne.s32.totalorder %s159, %s160
      %p169 = scmp.eq.s32.totalorder %s20, 0
      %p170 = por %p168, %p169
      %p171 = scmp.ne.s32.totalorder %s159, %s160
      %p172 = scmp.eq.s32.totalorder %s21, 1
      %p173 = por %p171, %p172
      %p175 = scmp.ne.s32.totalorder %s160, %s174
      %p176 = scmp.eq.s32.totalorder %s21, 0
      %p177 = por %p175, %p176
      %s178 = ssub.s32 %s22, %s34
      %s179 = ssub.s32 %s23, %s30
      %s180 = sor.u32 %s178, %s179
      %p181 = scmp.eq.s32.totalorder %s180, 0
      %s183 = sadd.s32 %s182, 1
      %s184 = scalar_select %p181, %s182, %s183
      %p187 = pneg %p181
      %p188 = scmp.eq.s32.totalorder %s15, 1
      %p189 = por %p187, %p188
      %p190 = scmp.ne.s32.totalorder %s182, %s185
      %p191 = scmp.eq.s32.totalorder %s15, 0
      %p192 = por %p190, %p191
      %p193 = scmp.ne.s32.totalorder %s182, %s185
      %p194 = scmp.eq.s32.totalorder %s20, 1
      %p195 = por %p193, %p194
      %p196 = scmp.ne.s32.totalorder %s185, %s186
      %p197 = scmp.eq.s32.totalorder %s20, 0
      %p198 = por %p196, %p197
      %p199 = scmp.ne.s32.totalorder %s185, %s186
      %p200 = scmp.eq.s32.totalorder %s21, 1
      %p201 = por %p199, %p200
      %p203 = scmp.ne.s32.totalorder %s186, %s202
      %p204 = scmp.eq.s32.totalorder %s21, 0
      %p205 = por %p203, %p204
      %p206 = scmp.le.s32.totalorder 1, %s15
      %p207 = scmp.lt.s32.totalorder %s15, 3
      %p208 = pnand %p206, %p207
      %p209 = pneg %p208
      // Predicated region
      $region9: #{tpu_custom_call.1} parent=5 // pred_check
        _
      $region10: #{tpu_custom_call.1} parent=5 // pred_check_branch
        %211 = sbr.rel (%p208) target = $region12
      $region11: #{tpu_custom_call.1} parent=5 // pred_region
        %s212 = ssub.s32 %s15, 1
        // Predicated region
        $region13: #{tpu_custom_call.1} parent=11 // pred_check
          %p213 = pneg %p128
        $region14: #{tpu_custom_call.1} parent=11 // pred_check_branch
          %215 = sbr.rel (%p213) target = $region16
        $region15: #{tpu_custom_call.1} parent=11 // pred_region
          _
        $region16: #{tpu_custom_call.1} parent=11 // pred_fallthru
          _
        // Predicated region
        $region17: #{tpu_custom_call.1} parent=11 // pred_check
          %p216 = pneg %p149
        $region18: #{tpu_custom_call.1} parent=11 // pred_check_branch
          %218 = sbr.rel (%p216) target = $region20
        $region19: #{tpu_custom_call.1} parent=11 // pred_region
          _
        $region20: #{tpu_custom_call.1} parent=11 // pred_fallthru
          _
        // Predicated region
        $region21: #{tpu_custom_call.1} parent=11 // pred_check
          %p219 = pneg %p170
        $region22: #{tpu_custom_call.1} parent=11 // pred_check_branch
          %221 = sbr.rel (%p219) target = $region24
        $region23: #{tpu_custom_call.1} parent=11 // pred_region
          _
        $region24: #{tpu_custom_call.1} parent=11 // pred_fallthru
          _
      $region12: #{tpu_custom_call.1} parent=5 // pred_fallthru
        _
      %p222 = scmp.lt.s32.totalorder %s15, 2
      // Predicated region
      $region25: #{tpu_custom_call.1} parent=5 // pred_check
        %p223 = pneg %p222
      $region26: #{tpu_custom_call.1} parent=5 // pred_check_branch
        %225 = sbr.rel (%p223) target = $region28
      $region27: #{tpu_custom_call.1} parent=5 // pred_region
        // Predicated region
        $region29: #{tpu_custom_call.1} parent=27 // pred_check
          %p226 = pneg %p49
        $region30: #{tpu_custom_call.1} parent=27 // pred_check_branch
          %228 = sbr.rel (%p226) target = $region32
        $region31: #{tpu_custom_call.1} parent=27 // pred_region
          %p229 = scmp.lt.s32.totalorder %s22, 1
          %s230 = scalar_select %p229, %s22, 1
          %p231 = scmp.lt.s32.totalorder %s23, 0
          %s232 = scalar_select %p231, %s23, 0
          %s233 = sadd.s32 %s232, %s230
          %s234 = smul.addr %s233, 4
          %s235 = scalar_lea.vmem %s0, %s234
        $region32: #{tpu_custom_call.1} parent=27 // pred_fallthru
          _
        // Predicated region
        $region33: #{tpu_custom_call.1} parent=27 // pred_check
          %p236 = pneg %p75
        $region34: #{tpu_custom_call.1} parent=27 // pred_check_branch
          %238 = sbr.rel (%p236) target = $region36
        $region35: #{tpu_custom_call.1} parent=27 // pred_region
          %p239 = scmp.lt.s32.totalorder %s22, 1
          %s240 = scalar_select %p239, %s22, 1
          %s241 = smul.addr %s240, 4
          %s242 = smul.addr %s241, 4
          %s243 = scalar_lea.vmem %s1, %s242
        $region36: #{tpu_custom_call.1} parent=27 // pred_fallthru
          _
        // Predicated region
        $region37: #{tpu_custom_call.1} parent=27 // pred_check
          %p244 = pneg %p101
        $region38: #{tpu_custom_call.1} parent=27 // pred_check_branch
          %246 = sbr.rel (%p244) target = $region40
        $region39: #{tpu_custom_call.1} parent=27 // pred_region
          %p247 = scmp.lt.s32.totalorder %s22, 1
          %s248 = scalar_select %p247, %s22, 1
          %s249 = smul.addr %s248, 4
          %s250 = smul.addr %s249, 4
          %s251 = scalar_lea.vmem %s2, %s250
        $region40: #{tpu_custom_call.1} parent=27 // pred_fallthru
          _
      $region28: #{tpu_custom_call.1} parent=5 // pred_fallthru
        _
      %p252 = scmp.le.s32.totalorder 1, %s15
      %p253 = scmp.lt.s32.totalorder %s15, 3
      %p254 = pnand %p252, %p253
      %p255 = pneg %p254
      // Predicated region
      $region41: #{tpu_custom_call.1} parent=5 // pred_check
        _
      $region42: #{tpu_custom_call.1} parent=5 // pred_check_branch
        %257 = sbr.rel (%p254) target = $region44
      $region43: #{tpu_custom_call.1} parent=5 // pred_region
        %s258 = ssub.s32 %s15, 1
        %p259 = scmp.lt.s32.totalorder %s24, 1
        %s260 = scalar_select %p259, %s24, 1
        %p261 = scmp.lt.s32.totalorder %s25, 0
        %s262 = scalar_select %p261, %s25, 0
        %s263 = sadd.s32 %s262, %s260
        %s264 = smul.addr %s263, 4
        %s265 = scalar_lea.vmem %s0, %s264
        %p266 = pneg %p55
        %p267 = pneg %p52
        %p268 = scmp.lt.s32.totalorder %s24, 1
        %s269 = scalar_select %p268, %s24, 1
        %s270 = smul.addr %s269, 4
        %s271 = smul.addr %s270, 4
        %s272 = scalar_lea.vmem %s1, %s271
        %p273 = pneg %p81
        %p274 = pneg %p78
        %p275 = scmp.lt.s32.totalorder %s24, 1
        %s276 = scalar_select %p275, %s24, 1
        %s277 = smul.addr %s276, 4
        %s278 = smul.addr %s277, 4
        %s279 = scalar_lea.vmem %s2, %s278
        %p280 = pneg %p107
        %p281 = pneg %p104
        %p282 = pneg %p128
        %p283 = pneg %p125
        %p284 = pneg %p149
        %p285 = pneg %p146
        %p286 = pneg %p170
        %p287 = pneg %p167
        %p288 = pneg %p198
        %p289 = pneg %p195
        %s290 = sand.u32 %s185, 1
        %s291 = scalar_lea.sflag [#allocation4], %s290
        %s292 = sand.u32 %s185, 1
        %s293 = smul.addr %s292, 8
        %s294 = scalar_lea.vmem [#allocation3], %s293
        %p295 = scmp.lt.s32.totalorder %s24, 1
        %s296 = scalar_select %p295, %s24, 1
        %p297 = scmp.lt.s32.totalorder %s25, 0
        %s298 = scalar_select %p297, %s25, 0
        %s299 = sadd.s32 %s298, %s296
        %s300 = smul.addr %s299, 4
        %s301 = scalar_lea.vmem %s0, %s300
        %p302 = scmp.lt.s32.totalorder %s24, 1
        %s303 = scalar_select %p302, %s24, 1
        %s304 = smul.addr %s303, 4
        %s305 = smul.addr %s304, 4
        %s306 = scalar_lea.vmem %s1, %s305
        %p307 = scmp.lt.s32.totalorder %s24, 1
        %s308 = scalar_select %p307, %s24, 1
        %s309 = smul.addr %s308, 4
        %s310 = smul.addr %s309, 4
        %s311 = scalar_lea.vmem %s2, %s310
        %v313 = vld [vmem:[%s301] sm:$0xf]
        %v314 = vld [vmem:[%s3] sm:$0xff]
        %v315 = vld [vmem:[%s3 + $0x8] sm:$0xff]
        %v316 = vld [vmem:[%s3 + $0x10] sm:$0xff]
        %v317 = vld [vmem:[%s3 + $0x18] sm:$0xff]
        %v318 = vld [vmem:[%s3 + $0x20] sm:$0xff]
        %v319 = vld [vmem:[%s3 + $0x28] sm:$0xff]
        %v320 = vld [vmem:[%s3 + $0x30] sm:$0xff]
        %v321 = vld [vmem:[%s3 + $0x38] sm:$0xff]
        %v330 = vunpack.c.l.b16 %v314
        %v331 = vunpack.c.h.b16 %v314
        %v332 = vunpack.c.l.b16 %v315
        %v333 = vunpack.c.h.b16 %v315
        %v334 = vunpack.c.l.b16 %v316
        %v335 = vunpack.c.h.b16 %v316
        %v336 = vunpack.c.l.b16 %v317
        %v337 = vunpack.c.h.b16 %v317
        %v338 = vunpack.c.l.b16 %v318
        %v339 = vunpack.c.h.b16 %v318
        %v340 = vunpack.c.l.b16 %v319
        %v341 = vunpack.c.h.b16 %v319
        %v342 = vunpack.c.l.b16 %v320
        %v343 = vunpack.c.h.b16 %v320
        %v344 = vunpack.c.l.b16 %v321
        %v345 = vunpack.c.h.b16 %v321
        %v346 = vpack.c.b16 %v334, %v330
        %v347 = vpack.c.b16 %v335, %v331
        %v348 = vpack.c.b16 %v336, %v332
        %v349 = vpack.c.b16 %v337, %v333
        %v350 = vpack.c.b16 %v342, %v338
        %v351 = vpack.c.b16 %v343, %v339
        %v352 = vpack.c.b16 %v344, %v340
        %v353 = vpack.c.b16 %v345, %v341
        %vm362 = vcmask 261120
        %v364 = vsel %vm362, %v313, 0
        %366 = vmatpush.bf16.msra.mxu0 0
        %367 = vmatpush.bf16.msra.mxu0 0
        %368 = vmatpush.bf16.msra.mxu0 0
        %369 = vmatpush.bf16.msra.mxu0 0
        %370 = vmatpush.bf16.msra.mxu0 0
        %371 = vmatpush.bf16.msra.mxu0 0
        %372 = vmatpush.bf16.msra.mxu0 %v350
        %373 = vmatpush.bf16.msra.mxu0 %v346
        %374 = vmatmul.bf16.gmra.mxu0 %v364
        %v375 = vpop.f32.mrf.mxu0
        %v376 = vadd.f32 0.0, %v375
        %v377 = vpop.f32.mrf.mxu0
        %378 = vdwg.mxu0
        %379 = vmatpush.bf16.msra.mxu0 0
        %380 = vmatpush.bf16.msra.mxu0 0
        %381 = vmatpush.bf16.msra.mxu0 0
        %382 = vmatpush.bf16.msra.mxu0 0
        %383 = vmatpush.bf16.msra.mxu0 0
        %384 = vmatpush.bf16.msra.mxu0 0
        %385 = vmatpush.bf16.msra.mxu0 %v351
        %386 = vmatpush.bf16.msra.mxu0 %v347
        %387 = vmatmul.bf16.gmra.mxu0 %v364
        %v388 = vpop.f32.mrf.mxu0
        %v389 = vadd.f32 0.0, %v388
        %v390 = vpop.f32.mrf.mxu0
        %391 = vdwg.mxu0
        %392 = vmatpush.bf16.msra.mxu0 0
        %393 = vmatpush.bf16.msra.mxu0 0
        %394 = vmatpush.bf16.msra.mxu0 0
        %395 = vmatpush.bf16.msra.mxu0 0
        %396 = vmatpush.bf16.msra.mxu0 0
        %397 = vmatpush.bf16.msra.mxu0 0
        %398 = vmatpush.bf16.msra.mxu0 %v352
        %399 = vmatpush.bf16.msra.mxu0 %v348
        %400 = vmatmul.bf16.gmra.mxu0 %v364
        %v401 = vpop.f32.mrf.mxu0
        %v402 = vadd.f32 0.0, %v401
        %v403 = vpop.f32.mrf.mxu0
        %404 = vdwg.mxu0
        %405 = vmatpush.bf16.msra.mxu0 0
        %406 = vmatpush.bf16.msra.mxu0 0
        %407 = vmatpush.bf16.msra.mxu0 0
        %408 = vmatpush.bf16.msra.mxu0 0
        %409 = vmatpush.bf16.msra.mxu0 0
        %410 = vmatpush.bf16.msra.mxu0 0
        %411 = vmatpush.bf16.msra.mxu0 %v353
        %412 = vmatpush.bf16.msra.mxu0 %v349
        %413 = vmatmul.bf16.gmra.mxu0 %v364
        %v414 = vpop.f32.mrf.mxu0
        %v415 = vadd.f32 0.0, %v414
        %v416 = vpop.f32.mrf.mxu0
        %417 = vdwg.mxu0
        %v418 = vpack.c.bf16 %v389, %v376
        %v419 = vpack.c.bf16 %v415, %v402
        %v420 = vld [vmem:[%s306] sm:$0xf]
        %v421 = vld [vmem:[%s311] sm:$0xf]
        %vm422 = vcmask 523264
        %v424 = vsel %vm422, %v418, 0
        %v427 = vsel %vm422, %v420, 0
        %429 = vmatpush.bf16.xpose.msra.mxu0 0
        %430 = vmatpush.bf16.xpose.msra.mxu0 0
        %431 = vmatpush.bf16.xpose.msra.mxu0 0
        %432 = vmatpush.bf16.xpose.msra.mxu0 0
        %433 = vmatpush.bf16.xpose.msra.mxu0 0
        %434 = vmatpush.bf16.xpose.msra.mxu0 0
        %435 = vmatpush.bf16.xpose.msra.mxu0 0
        %436 = vmatpush.bf16.xpose.msra.mxu0 %v427
        %437 = vmatmul.bf16.gmra.mxu0 %v424
        %v438 = vpop.f32.mrf.mxu0
        %v439 = vadd.f32 0.0, %v438
        %v440 = vpop.f32.mrf.mxu0
        %441 = vdwg.mxu0
        %vm442 = vcmask 64512
        %v443 = vsel %vm442, %v439, -inf
        %444 = vmax.xlane.f32.xlu0 %v443
        %v445 = vpop.xlane.xlu0 %444
        %v446 = vsub.f32 %v439, %v445
        %v447 = vmul.f32 %v446, 1.442695
        %v448 = vpow.pop %v447
        %v449 = vsel %vm442, %v448, 0.0
        %450 = vadd.xlane.f32.xlu0 %v449
        %v451 = vpop.xlane.xlu0 %450
        %v452 = vrcp.pop %v451
        %v453 = vmul.f32 %v448, %v452
        %v454 = vpack.c.bf16 %v453, %v453
        %v456 = vsel %vm442, %v454, 0
        %vm458 = vcmask 1043456
        %v460 = vsel %vm458, %v421, 0
        %462 = vmatpush.bf16.msra.mxu0 0
        %463 = vmatpush.bf16.msra.mxu0 0
        %464 = vmatpush.bf16.msra.mxu0 0
        %465 = vmatpush.bf16.msra.mxu0 0
        %466 = vmatpush.bf16.msra.mxu0 0
        %467 = vmatpush.bf16.msra.mxu0 0
        %468 = vmatpush.bf16.msra.mxu0 0
        %469 = vmatpush.bf16.msra.mxu0 %v460
        %470 = vmatmul.bf16.gmra.mxu0 %v456
        %v471 = vpop.f32.mrf.mxu0
        %v472 = vadd.f32 0.0, %v471
        %v473 = vpop.f32.mrf.mxu0
        %474 = vdwg.mxu0
        %v475 = vpack.c.bf16 %v472, %v472
        %vm476 = vcmask 519168
        %477 = vst.msk [vmem:[#allocation2] sm:$0xf] %vm476, %v475
        %v478 = vld [vmem:[%s306] sm:$0xf]
        %v479 = vld [vmem:[%s311] sm:$0xf]
        %v481 = vunpack.c.l.b16 %v418
        %v482 = vpack.c.b16 %v481, %v481
        %483 = vrot.lane.b32.xlu0 %v482, 64
        %v484 = vpop.permute.xlu0 %483
        %v486 = vunpack.c.l.b16 %v478
        %v487 = vpack.c.b16 %v486, %v486
        %488 = vrot.lane.b32.xlu0 %v487, 64
        %v489 = vpop.permute.xlu0 %488
        %v491 = vsel %vm422, %v484, 0
        %v494 = vsel %vm422, %v489, 0
        %496 = vmatpush.bf16.xpose.msra.mxu0 0
        %497 = vmatpush.bf16.xpose.msra.mxu0 0
        %498 = vmatpush.bf16.xpose.msra.mxu0 0
        %499 = vmatpush.bf16.xpose.msra.mxu0 0
        %500 = vmatpush.bf16.xpose.msra.mxu0 0
        %501 = vmatpush.bf16.xpose.msra.mxu0 0
        %502 = vmatpush.bf16.xpose.msra.mxu0 0
        %503 = vmatpush.bf16.xpose.msra.mxu0 %v494
        %504 = vmatmul.bf16.gmra.mxu0 %v491
        %v505 = vpop.f32.mrf.mxu0
        %v506 = vadd.f32 0.0, %v505
        %v507 = vpop.f32.mrf.mxu0
        %508 = vdwg.mxu0
        %v509 = vsel %vm442, %v506, -inf
        %510 = vmax.xlane.f32.xlu0 %v509
        %v511 = vpop.xlane.xlu0 %510
        %v512 = vsub.f32 %v506, %v511
        %v513 = vmul.f32 %v512, 1.442695
        %v514 = vpow.pop %v513
        %v515 = vsel %vm442, %v514, 0.0
        %516 = vadd.xlane.f32.xlu0 %v515
        %v517 = vpop.xlane.xlu0 %516
        %v518 = vrcp.pop %v517
        %v519 = vmul.f32 %v514, %v518
        %v520 = vpack.c.bf16 %v519, %v519
        %v522 = vunpack.c.l.b16 %v479
        %v523 = vpack.c.b16 %v522, %v522
        %524 = vrot.lane.b32.xlu0 %v523, 64
        %v525 = vpop.permute.xlu0 %524
        %v527 = vsel %vm442, %v520, 0
        %v530 = vsel %vm458, %v525, 0
        %532 = vmatpush.bf16.msra.mxu0 0
        %533 = vmatpush.bf16.msra.mxu0 0
        %534 = vmatpush.bf16.msra.mxu0 0
        %535 = vmatpush.bf16.msra.mxu0 0
        %536 = vmatpush.bf16.msra.mxu0 0
        %537 = vmatpush.bf16.msra.mxu0 0
        %538 = vmatpush.bf16.msra.mxu0 0
        %539 = vmatpush.bf16.msra.mxu0 %v530
        %540 = vmatmul.bf16.gmra.mxu0 %v527
        %v541 = vpop.f32.mrf.mxu0
        %v542 = vadd.f32 0.0, %v541
        %v543 = vpop.f32.mrf.mxu0
        %544 = vdwg.mxu0
        %v545 = vpack.c.bf16 %v542, %v542
        %547 = vrot.lane.b32.xlu0 %v545, 64
        %v548 = vpop.permute.xlu0 %547
        %vm550 = vcmask 1043968
        %551 = vst.msk [vmem:[#allocation2] sm:$0xf] %vm550, %v548
        %v552 = vld [vmem:[%s306 + $0x4] sm:$0xf]
        %v553 = vld [vmem:[%s311 + $0x4] sm:$0xf]
        %v554 = vunpack.c.h.b16 %v418
        %v555 = vpack.c.b16 %v554, %v554
        %v557 = vsel %vm422, %v555, 0
        %v560 = vsel %vm422, %v552, 0
        %562 = vmatpush.bf16.xpose.msra.mxu0 0
        %563 = vmatpush.bf16.xpose.msra.mxu0 0
        %564 = vmatpush.bf16.xpose.msra.mxu0 0
        %565 = vmatpush.bf16.xpose.msra.mxu0 0
        %566 = vmatpush.bf16.xpose.msra.mxu0 0
        %567 = vmatpush.bf16.xpose.msra.mxu0 0
        %568 = vmatpush.bf16.xpose.msra.mxu0 0
        %569 = vmatpush.bf16.xpose.msra.mxu0 %v560
        %570 = vmatmul.bf16.gmra.mxu0 %v557
        %v571 = vpop.f32.mrf.mxu0
        %v572 = vadd.f32 0.0, %v571
        %v573 = vpop.f32.mrf.mxu0
        %574 = vdwg.mxu0
        %v575 = vsel %vm442, %v572, -inf
        %576 = vmax.xlane.f32.xlu0 %v575
        %v577 = vpop.xlane.xlu0 %576
        %v578 = vsub.f32 %v572, %v577
        %v579 = vmul.f32 %v578, 1.442695
        %v580 = vpow.pop %v579
        %v581 = vsel %vm442, %v580, 0.0
        %582 = vadd.xlane.f32.xlu0 %v581
        %v583 = vpop.xlane.xlu0 %582
        %v584 = vrcp.pop %v583
        %v585 = vmul.f32 %v580, %v584
        %v586 = vpack.c.bf16 %v585, %v585
        %v588 = vsel %vm442, %v586, 0
        %v591 = vsel %vm458, %v553, 0
        %593 = vmatpush.bf16.msra.mxu0 0
        %594 = vmatpush.bf16.msra.mxu0 0
        %595 = vmatpush.bf16.msra.mxu0 0
        %596 = vmatpush.bf16.msra.mxu0 0
        %597 = vmatpush.bf16.msra.mxu0 0
        %598 = vmatpush.bf16.msra.mxu0 0
        %599 = vmatpush.bf16.msra.mxu0 0
        %600 = vmatpush.bf16.msra.mxu0 %v591
        %601 = vmatmul.bf16.gmra.mxu0 %v588
        %v602 = vpop.f32.mrf.mxu0
        %v603 = vadd.f32 0.0, %v602
        %v604 = vpop.f32.mrf.mxu0
        %605 = vdwg.mxu0
        %v606 = vpack.c.bf16 %v603, %v603
        %607 = vst.msk [vmem:[#allocation2 + $0x4] sm:$0xf] %vm476, %v606
        %v608 = vld [vmem:[%s306 + $0x4] sm:$0xf]
        %v609 = vld [vmem:[%s311 + $0x4] sm:$0xf]
        %610 = vrot.lane.b32.xlu0 %v555, 64
        %v611 = vpop.permute.xlu0 %610
        %v613 = vunpack.c.l.b16 %v608
        %v614 = vpack.c.b16 %v613, %v613
        %615 = vrot.lane.b32.xlu0 %v614, 64
        %v616 = vpop.permute.xlu0 %615
        %v618 = vsel %vm422, %v611, 0
        %v621 = vsel %vm422, %v616, 0
        %623 = vmatpush.bf16.xpose.msra.mxu0 0
        %624 = vmatpush.bf16.xpose.msra.mxu0 0
        %625 = vmatpush.bf16.xpose.msra.mxu0 0
        %626 = vmatpush.bf16.xpose.msra.mxu0 0
        %627 = vmatpush.bf16.xpose.msra.mxu0 0
        %628 = vmatpush.bf16.xpose.msra.mxu0 0
        %629 = vmatpush.bf16.xpose.msra.mxu0 0
        %630 = vmatpush.bf16.xpose.msra.mxu0 %v621
        %631 = vmatmul.bf16.gmra.mxu0 %v618
        %v632 = vpop.f32.mrf.mxu0
        %v633 = vadd.f32 0.0, %v632
        %v634 = vpop.f32.mrf.mxu0
        %635 = vdwg.mxu0
        %v636 = vsel %vm442, %v633, -inf
        %637 = vmax.xlane.f32.xlu0 %v636
        %v638 = vpop.xlane.xlu0 %637
        %v639 = vsub.f32 %v633, %v638
        %v640 = vmul.f32 %v639, 1.442695
        %v641 = vpow.pop %v640
        %v642 = vsel %vm442, %v641, 0.0
        %643 = vadd.xlane.f32.xlu0 %v642
        %v644 = vpop.xlane.xlu0 %643
        %v645 = vrcp.pop %v644
        %v646 = vmul.f32 %v641, %v645
        %v647 = vpack.c.bf16 %v646, %v646
        %v649 = vunpack.c.l.b16 %v609
        %v650 = vpack.c.b16 %v649, %v649
        %651 = vrot.lane.b32.xlu0 %v650, 64
        %v652 = vpop.permute.xlu0 %651
        %v654 = vsel %vm442, %v647, 0
        %v657 = vsel %vm458, %v652, 0
        %659 = vmatpush.bf16.msra.mxu0 0
        %660 = vmatpush.bf16.msra.mxu0 0
        %661 = vmatpush.bf16.msra.mxu0 0
        %662 = vmatpush.bf16.msra.mxu0 0
        %663 = vmatpush.bf16.msra.mxu0 0
        %664 = vmatpush.bf16.msra.mxu0 0
        %665 = vmatpush.bf16.msra.mxu0 0
        %666 = vmatpush.bf16.msra.mxu0 %v657
        %667 = vmatmul.bf16.gmra.mxu0 %v654
        %v668 = vpop.f32.mrf.mxu0
        %v669 = vadd.f32 0.0, %v668
        %v670 = vpop.f32.mrf.mxu0
        %671 = vdwg.mxu0
        %v672 = vpack.c.bf16 %v669, %v669
        %674 = vrot.lane.b32.xlu0 %v672, 64
        %v675 = vpop.permute.xlu0 %674
        %677 = vst.msk [vmem:[#allocation2 + $0x4] sm:$0xf] %vm550, %v675
        %v678 = vld [vmem:[%s306 + $0x8] sm:$0xf]
        %v679 = vld [vmem:[%s311 + $0x8] sm:$0xf]
        %v681 = vsel %vm422, %v419, 0
        %v684 = vsel %vm422, %v678, 0
        %686 = vmatpush.bf16.xpose.msra.mxu0 0
        %687 = vmatpush.bf16.xpose.msra.mxu0 0
        %688 = vmatpush.bf16.xpose.msra.mxu0 0
        %689 = vmatpush.bf16.xpose.msra.mxu0 0
        %690 = vmatpush.bf16.xpose.msra.mxu0 0
        %691 = vmatpush.bf16.xpose.msra.mxu0 0
        %692 = vmatpush.bf16.xpose.msra.mxu0 0
        %693 = vmatpush.bf16.xpose.msra.mxu0 %v684
        %694 = vmatmul.bf16.gmra.mxu0 %v681
        %v695 = vpop.f32.mrf.mxu0
        %v696 = vadd.f32 0.0, %v695
        %v697 = vpop.f32.mrf.mxu0
        %698 = vdwg.mxu0
        %v699 = vsel %vm442, %v696, -inf
        %700 = vmax.xlane.f32.xlu0 %v699
        %v701 = vpop.xlane.xlu0 %700
        %v702 = vsub.f32 %v696, %v701
        %v703 = vmul.f32 %v702, 1.442695
        %v704 = vpow.pop %v703
        %v705 = vsel %vm442, %v704, 0.0
        %706 = vadd.xlane.f32.xlu0 %v705
        %v707 = vpop.xlane.xlu0 %706
        %v708 = vrcp.pop %v707
        %v709 = vmul.f32 %v704, %v708
        %v710 = vpack.c.bf16 %v709, %v709
        %v712 = vsel %vm442, %v710, 0
        %v715 = vsel %vm458, %v679, 0
        %717 = vmatpush.bf16.msra.mxu0 0
        %718 = vmatpush.bf16.msra.mxu0 0
        %719 = vmatpush.bf16.msra.mxu0 0
        %720 = vmatpush.bf16.msra.mxu0 0
        %721 = vmatpush.bf16.msra.mxu0 0
        %722 = vmatpush.bf16.msra.mxu0 0
        %723 = vmatpush.bf16.msra.mxu0 0
        %724 = vmatpush.bf16.msra.mxu0 %v715
        %725 = vmatmul.bf16.gmra.mxu0 %v712
        %v726 = vpop.f32.mrf.mxu0
        %v727 = vadd.f32 0.0, %v726
        %v728 = vpop.f32.mrf.mxu0
        %729 = vdwg.mxu0
        %v730 = vpack.c.bf16 %v727, %v727
        %731 = vst.msk [vmem:[#allocation2 + $0x8] sm:$0xf] %vm476, %v730
        %v732 = vld [vmem:[%s306 + $0x8] sm:$0xf]
        %v733 = vld [vmem:[%s311 + $0x8] sm:$0xf]
        %v735 = vunpack.c.l.b16 %v419
        %v736 = vpack.c.b16 %v735, %v735
        %737 = vrot.lane.b32.xlu0 %v736, 64
        %v738 = vpop.permute.xlu0 %737
        %v740 = vunpack.c.l.b16 %v732
        %v741 = vpack.c.b16 %v740, %v740
        %742 = vrot.lane.b32.xlu0 %v741, 64
        %v743 = vpop.permute.xlu0 %742
        %v745 = vsel %vm422, %v738, 0
        %v748 = vsel %vm422, %v743, 0
        %750 = vmatpush.bf16.xpose.msra.mxu0 0
        %751 = vmatpush.bf16.xpose.msra.mxu0 0
        %752 = vmatpush.bf16.xpose.msra.mxu0 0
        %753 = vmatpush.bf16.xpose.msra.mxu0 0
        %754 = vmatpush.bf16.xpose.msra.mxu0 0
        %755 = vmatpush.bf16.xpose.msra.mxu0 0
        %756 = vmatpush.bf16.xpose.msra.mxu0 0
        %757 = vmatpush.bf16.xpose.msra.mxu0 %v748
        %758 = vmatmul.bf16.gmra.mxu0 %v745
        %v759 = vpop.f32.mrf.mxu0
        %v760 = vadd.f32 0.0, %v759
        %v761 = vpop.f32.mrf.mxu0
        %762 = vdwg.mxu0
        %v763 = vsel %vm442, %v760, -inf
        %764 = vmax.xlane.f32.xlu0 %v763
        %v765 = vpop.xlane.xlu0 %764
        %v766 = vsub.f32 %v760, %v765
        %v767 = vmul.f32 %v766, 1.442695
        %v768 = vpow.pop %v767
        %v769 = vsel %vm442, %v768, 0.0
        %770 = vadd.xlane.f32.xlu0 %v769
        %v771 = vpop.xlane.xlu0 %770
        %v772 = vrcp.pop %v771
        %v773 = vmul.f32 %v768, %v772
        %v774 = vpack.c.bf16 %v773, %v773
        %v776 = vunpack.c.l.b16 %v733
        %v777 = vpack.c.b16 %v776, %v776
        %778 = vrot.lane.b32.xlu0 %v777, 64
        %v779 = vpop.permute.xlu0 %778
        %v781 = vsel %vm442, %v774, 0
        %v784 = vsel %vm458, %v779, 0
        %786 = vmatpush.bf16.msra.mxu0 0
        %787 = vmatpush.bf16.msra.mxu0 0
        %788 = vmatpush.bf16.msra.mxu0 0
        %789 = vmatpush.bf16.msra.mxu0 0
        %790 = vmatpush.bf16.msra.mxu0 0
        %791 = vmatpush.bf16.msra.mxu0 0
        %792 = vmatpush.bf16.msra.mxu0 0
        %793 = vmatpush.bf16.msra.mxu0 %v784
        %794 = vmatmul.bf16.gmra.mxu0 %v781
        %v795 = vpop.f32.mrf.mxu0
        %v796 = vadd.f32 0.0, %v795
        %v797 = vpop.f32.mrf.mxu0
        %798 = vdwg.mxu0
        %v799 = vpack.c.bf16 %v796, %v796
        %801 = vrot.lane.b32.xlu0 %v799, 64
        %v802 = vpop.permute.xlu0 %801
        %804 = vst.msk [vmem:[#allocation2 + $0x8] sm:$0xf] %vm550, %v802
        %v805 = vld [vmem:[%s306 + $0xc] sm:$0xf]
        %v806 = vld [vmem:[%s311 + $0xc] sm:$0xf]
        %v807 = vunpack.c.h.b16 %v419
        %v808 = vpack.c.b16 %v807, %v807
        %v810 = vsel %vm422, %v808, 0
        %v813 = vsel %vm422, %v805, 0
        %815 = vmatpush.bf16.xpose.msra.mxu0 0
        %816 = vmatpush.bf16.xpose.msra.mxu0 0
        %817 = vmatpush.bf16.xpose.msra.mxu0 0
        %818 = vmatpush.bf16.xpose.msra.mxu0 0
        %819 = vmatpush.bf16.xpose.msra.mxu0 0
        %820 = vmatpush.bf16.xpose.msra.mxu0 0
        %821 = vmatpush.bf16.xpose.msra.mxu0 0
        %822 = vmatpush.bf16.xpose.msra.mxu0 %v813
        %823 = vmatmul.bf16.gmra.mxu0 %v810
        %v824 = vpop.f32.mrf.mxu0
        %v825 = vadd.f32 0.0, %v824
        %v826 = vpop.f32.mrf.mxu0
        %827 = vdwg.mxu0
        %v828 = vsel %vm442, %v825, -inf
        %829 = vmax.xlane.f32.xlu0 %v828
        %v830 = vpop.xlane.xlu0 %829
        %v831 = vsub.f32 %v825, %v830
        %v832 = vmul.f32 %v831, 1.442695
        %v833 = vpow.pop %v832
        %v834 = vsel %vm442, %v833, 0.0
        %835 = vadd.xlane.f32.xlu0 %v834
        %v836 = vpop.xlane.xlu0 %835
        %v837 = vrcp.pop %v836
        %v838 = vmul.f32 %v833, %v837
        %v839 = vpack.c.bf16 %v838, %v838
        %v841 = vsel %vm442, %v839, 0
        %v844 = vsel %vm458, %v806, 0
        %846 = vmatpush.bf16.msra.mxu0 0
        %847 = vmatpush.bf16.msra.mxu0 0
        %848 = vmatpush.bf16.msra.mxu0 0
        %849 = vmatpush.bf16.msra.mxu0 0
        %850 = vmatpush.bf16.msra.mxu0 0
        %851 = vmatpush.bf16.msra.mxu0 0
        %852 = vmatpush.bf16.msra.mxu0 0
        %853 = vmatpush.bf16.msra.mxu0 %v844
        %854 = vmatmul.bf16.gmra.mxu0 %v841
        %v855 = vpop.f32.mrf.mxu0
        %v856 = vadd.f32 0.0, %v855
        %v857 = vpop.f32.mrf.mxu0
        %858 = vdwg.mxu0
        %v859 = vpack.c.bf16 %v856, %v856
        %860 = vst.msk [vmem:[#allocation2 + $0xc] sm:$0xf] %vm476, %v859
        %v861 = vld [vmem:[%s306 + $0xc] sm:$0xf]
        %v862 = vld [vmem:[%s311 + $0xc] sm:$0xf]
        %863 = vrot.lane.b32.xlu0 %v808, 64
        %v864 = vpop.permute.xlu0 %863
        %v866 = vunpack.c.l.b16 %v861
        %v867 = vpack.c.b16 %v866, %v866
        %868 = vrot.lane.b32.xlu0 %v867, 64
        %v869 = vpop.permute.xlu0 %868
        %v871 = vsel %vm422, %v864, 0
        %v874 = vsel %vm422, %v869, 0
        %876 = vmatpush.bf16.xpose.msra.mxu0 0
        %877 = vmatpush.bf16.xpose.msra.mxu0 0
        %878 = vmatpush.bf16.xpose.msra.mxu0 0
        %879 = vmatpush.bf16.xpose.msra.mxu0 0
        %880 = vmatpush.bf16.xpose.msra.mxu0 0
        %881 = vmatpush.bf16.xpose.msra.mxu0 0
        %882 = vmatpush.bf16.xpose.msra.mxu0 0
        %883 = vmatpush.bf16.xpose.msra.mxu0 %v874
        %884 = vmatmul.bf16.gmra.mxu0 %v871
        %v885 = vpop.f32.mrf.mxu0
        %v886 = vadd.f32 0.0, %v885
        %v887 = vpop.f32.mrf.mxu0
        %888 = vdwg.mxu0
        %v889 = vsel %vm442, %v886, -inf
        %890 = vmax.xlane.f32.xlu0 %v889
        %v891 = vpop.xlane.xlu0 %890
        %v892 = vsub.f32 %v886, %v891
        %v893 = vmul.f32 %v892, 1.442695
        %v894 = vpow.pop %v893
        %v895 = vsel %vm442, %v894, 0.0
        %896 = vadd.xlane.f32.xlu0 %v895
        %v897 = vpop.xlane.xlu0 %896
        %v898 = vrcp.pop %v897
        %v899 = vmul.f32 %v894, %v898
        %v900 = vpack.c.bf16 %v899, %v899
        %v902 = vunpack.c.l.b16 %v862
        %v903 = vpack.c.b16 %v902, %v902
        %904 = vrot.lane.b32.xlu0 %v903, 64
        %v905 = vpop.permute.xlu0 %904
        %v907 = vsel %vm442, %v900, 0
        %v910 = vsel %vm458, %v905, 0
        %912 = vmatpush.bf16.msra.mxu0 0
        %913 = vmatpush.bf16.msra.mxu0 0
        %914 = vmatpush.bf16.msra.mxu0 0
        %915 = vmatpush.bf16.msra.mxu0 0
        %916 = vmatpush.bf16.msra.mxu0 0
        %917 = vmatpush.bf16.msra.mxu0 0
        %918 = vmatpush.bf16.msra.mxu0 0
        %919 = vmatpush.bf16.msra.mxu0 %v910
        %920 = vmatmul.bf16.gmra.mxu0 %v907
        %v921 = vpop.f32.mrf.mxu0
        %v922 = vadd.f32 0.0, %v921
        %v923 = vpop.f32.mrf.mxu0
        %924 = vdwg.mxu0
        %v925 = vpack.c.bf16 %v922, %v922
        %927 = vrot.lane.b32.xlu0 %v925, 64
        %v928 = vpop.permute.xlu0 %927
        %930 = vst.msk [vmem:[#allocation2 + $0xc] sm:$0xf] %vm550, %v928
        %v931 = vld [vmem:[#allocation2] sm:$0xff]
        %v932 = vld [vmem:[#allocation2 + $0x8] sm:$0xff]
        %v933 = vld [vmem:[%s4] sm:$0xf]
        %v934 = vld [vmem:[%s4 + $0x4] sm:$0xf]
        %v935 = vld [vmem:[%s4 + $0x8] sm:$0xf]
        %v936 = vld [vmem:[%s4 + $0xc] sm:$0xf]
        %v937 = vld [vmem:[%s4 + $0x10] sm:$0xf]
        %v938 = vld [vmem:[%s4 + $0x14] sm:$0xf]
        %v939 = vld [vmem:[%s4 + $0x18] sm:$0xf]
        %v940 = vld [vmem:[%s4 + $0x1c] sm:$0xf]
        %v941 = vld [vmem:[%s4 + $0x20] sm:$0xf]
        %v942 = vld [vmem:[%s4 + $0x24] sm:$0xf]
        %v943 = vld [vmem:[%s4 + $0x28] sm:$0xf]
        %v944 = vld [vmem:[%s4 + $0x2c] sm:$0xf]
        %v945 = vld [vmem:[%s4 + $0x30] sm:$0xf]
        %v946 = vld [vmem:[%s4 + $0x34] sm:$0xf]
        %v947 = vld [vmem:[%s4 + $0x38] sm:$0xf]
        %v948 = vld [vmem:[%s4 + $0x3c] sm:$0xf]
        %v949 = vld [vmem:[%s4 + $0x40] sm:$0xf]
        %v950 = vld [vmem:[%s4 + $0x44] sm:$0xf]
        %v951 = vld [vmem:[%s4 + $0x48] sm:$0xf]
        %v952 = vld [vmem:[%s4 + $0x4c] sm:$0xf]
        %v953 = vld [vmem:[%s4 + $0x50] sm:$0xf]
        %v954 = vld [vmem:[%s4 + $0x54] sm:$0xf]
        %v955 = vld [vmem:[%s4 + $0x58] sm:$0xf]
        %v956 = vld [vmem:[%s4 + $0x5c] sm:$0xf]
        %v957 = vld [vmem:[%s4 + $0x60] sm:$0xf]
        %v958 = vld [vmem:[%s4 + $0x64] sm:$0xf]
        %v959 = vld [vmem:[%s4 + $0x68] sm:$0xf]
        %v960 = vld [vmem:[%s4 + $0x6c] sm:$0xf]
        %v961 = vld [vmem:[%s4 + $0x70] sm:$0xf]
        %v962 = vld [vmem:[%s4 + $0x74] sm:$0xf]
        %v963 = vld [vmem:[%s4 + $0x78] sm:$0xf]
        %v964 = vld [vmem:[%s4 + $0x7c] sm:$0xf]
        %v965 = vld [vmem:[%s4 + $0x80] sm:$0xf]
        %v966 = vld [vmem:[%s4 + $0x84] sm:$0xf]
        %v967 = vld [vmem:[%s4 + $0x88] sm:$0xf]
        %v968 = vld [vmem:[%s4 + $0x8c] sm:$0xf]
        %v969 = vld [vmem:[%s4 + $0x90] sm:$0xf]
        %v970 = vld [vmem:[%s4 + $0x94] sm:$0xf]
        %v971 = vld [vmem:[%s4 + $0x98] sm:$0xf]
        %v972 = vld [vmem:[%s4 + $0x9c] sm:$0xf]
        %v973 = vld [vmem:[%s4 + $0xa0] sm:$0xf]
        %v974 = vld [vmem:[%s4 + $0xa4] sm:$0xf]
        %v975 = vld [vmem:[%s4 + $0xa8] sm:$0xf]
        %v976 = vld [vmem:[%s4 + $0xac] sm:$0xf]
        %v977 = vld [vmem:[%s4 + $0xb0] sm:$0xf]
        %v978 = vld [vmem:[%s4 + $0xb4] sm:$0xf]
        %v979 = vld [vmem:[%s4 + $0xb8] sm:$0xf]
        %v980 = vld [vmem:[%s4 + $0xbc] sm:$0xf]
        %v981 = vld [vmem:[%s4 + $0xc0] sm:$0xf]
        %v982 = vld [vmem:[%s4 + $0xc4] sm:$0xf]
        %v983 = vld [vmem:[%s4 + $0xc8] sm:$0xf]
        %v984 = vld [vmem:[%s4 + $0xcc] sm:$0xf]
        %v985 = vld [vmem:[%s4 + $0xd0] sm:$0xf]
        %v986 = vld [vmem:[%s4 + $0xd4] sm:$0xf]
        %v987 = vld [vmem:[%s4 + $0xd8] sm:$0xf]
        %v988 = vld [vmem:[%s4 + $0xdc] sm:$0xf]
        %v989 = vld [vmem:[%s4 + $0xe0] sm:$0xf]
        %v990 = vld [vmem:[%s4 + $0xe4] sm:$0xf]
        %v991 = vld [vmem:[%s4 + $0xe8] sm:$0xf]
        %v992 = vld [vmem:[%s4 + $0xec] sm:$0xf]
        %v993 = vld [vmem:[%s4 + $0xf0] sm:$0xf]
        %v994 = vld [vmem:[%s4 + $0xf4] sm:$0xf]
        %v995 = vld [vmem:[%s4 + $0xf8] sm:$0xf]
        %v996 = vld [vmem:[%s4 + $0xfc] sm:$0xf]
        %v997 = vld [vmem:[%s5] sm:$0x1]
        %v999 = vperm.slane %v997, 0
        %v1003 = vunpack.c.l.b16 %v931
        %v1004 = vunpack.c.h.b16 %v931
        %v1005 = vunpack.c.l.b16 %v932
        %v1006 = vunpack.c.h.b16 %v932
        %v1007 = vpack.c.b16 %v1003, %v1003
        %v1008 = vpack.c.b16 %v1004, %v1004
        %v1009 = vpack.c.b16 %v1005, %v1005
        %v1010 = vpack.c.b16 %v1006, %v1006
        %v1079 = vunpack.c.l.b16 %v933
        %v1080 = vunpack.c.l.b16 %v934
        %v1081 = vunpack.c.l.b16 %v935
        %v1082 = vunpack.c.l.b16 %v936
        %v1083 = vunpack.c.l.b16 %v937
        %v1084 = vunpack.c.l.b16 %v938
        %v1085 = vunpack.c.l.b16 %v939
        %v1086 = vunpack.c.l.b16 %v940
        %v1087 = vunpack.c.l.b16 %v941
        %v1088 = vunpack.c.l.b16 %v942
        %v1089 = vunpack.c.l.b16 %v943
        %v1090 = vunpack.c.l.b16 %v944
        %v1091 = vunpack.c.l.b16 %v945
        %v1092 = vunpack.c.l.b16 %v946
        %v1093 = vunpack.c.l.b16 %v947
        %v1094 = vunpack.c.l.b16 %v948
        %v1095 = vunpack.c.l.b16 %v949
        %v1096 = vunpack.c.l.b16 %v950
        %v1097 = vunpack.c.l.b16 %v951
        %v1098 = vunpack.c.l.b16 %v952
        %v1099 = vunpack.c.l.b16 %v953
        %v1100 = vunpack.c.l.b16 %v954
        %v1101 = vunpack.c.l.b16 %v955
        %v1102 = vunpack.c.l.b16 %v956
        %v1103 = vunpack.c.l.b16 %v957
        %v1104 = vunpack.c.l.b16 %v958
        %v1105 = vunpack.c.l.b16 %v959
        %v1106 = vunpack.c.l.b16 %v960
        %v1107 = vunpack.c.l.b16 %v961
        %v1108 = vunpack.c.l.b16 %v962
        %v1109 = vunpack.c.l.b16 %v963
        %v1110 = vunpack.c.l.b16 %v964
        %v1111 = vunpack.c.l.b16 %v965
        %v1112 = vunpack.c.l.b16 %v966
        %v1113 = vunpack.c.l.b16 %v967
        %v1114 = vunpack.c.l.b16 %v968
        %v1115 = vunpack.c.l.b16 %v969
        %v1116 = vunpack.c.l.b16 %v970
        %v1117 = vunpack.c.l.b16 %v971
        %v1118 = vunpack.c.l.b16 %v972
        %v1119 = vunpack.c.l.b16 %v973
        %v1120 = vunpack.c.l.b16 %v974
        %v1121 = vunpack.c.l.b16 %v975
        %v1122 = vunpack.c.l.b16 %v976
        %v1123 = vunpack.c.l.b16 %v977
        %v1124 = vunpack.c.l.b16 %v978
        %v1125 = vunpack.c.l.b16 %v979
        %v1126 = vunpack.c.l.b16 %v980
        %v1127 = vunpack.c.l.b16 %v981
        %v1128 = vunpack.c.l.b16 %v982
        %v1129 = vunpack.c.l.b16 %v983
        %v1130 = vunpack.c.l.b16 %v984
        %v1131 = vunpack.c.l.b16 %v985
        %v1132 = vunpack.c.l.b16 %v986
        %v1133 = vunpack.c.l.b16 %v987
        %v1134 = vunpack.c.l.b16 %v988
        %v1135 = vunpack.c.l.b16 %v989
        %v1136 = vunpack.c.l.b16 %v990
        %v1137 = vunpack.c.l.b16 %v991
        %v1138 = vunpack.c.l.b16 %v992
        %v1139 = vunpack.c.l.b16 %v993
        %v1140 = vunpack.c.l.b16 %v994
        %v1141 = vunpack.c.l.b16 %v995
        %v1142 = vunpack.c.l.b16 %v996
        %v1143 = vpack.c.b16 %v1080, %v1079
        %v1144 = vpack.c.b16 %v1082, %v1081
        %v1145 = vpack.c.b16 %v1084, %v1083
        %v1146 = vpack.c.b16 %v1086, %v1085
        %v1147 = vpack.c.b16 %v1088, %v1087
        %v1148 = vpack.c.b16 %v1090, %v1089
        %v1149 = vpack.c.b16 %v1092, %v1091
        %v1150 = vpack.c.b16 %v1094, %v1093
        %v1151 = vpack.c.b16 %v1096, %v1095
        %v1152 = vpack.c.b16 %v1098, %v1097
        %v1153 = vpack.c.b16 %v1100, %v1099
        %v1154 = vpack.c.b16 %v1102, %v1101
        %v1155 = vpack.c.b16 %v1104, %v1103
        %v1156 = vpack.c.b16 %v1106, %v1105
        %v1157 = vpack.c.b16 %v1108, %v1107
        %v1158 = vpack.c.b16 %v1110, %v1109
        %v1159 = vpack.c.b16 %v1112, %v1111
        %v1160 = vpack.c.b16 %v1114, %v1113
        %v1161 = vpack.c.b16 %v1116, %v1115
        %v1162 = vpack.c.b16 %v1118, %v1117
        %v1163 = vpack.c.b16 %v1120, %v1119
        %v1164 = vpack.c.b16 %v1122, %v1121
        %v1165 = vpack.c.b16 %v1124, %v1123
        %v1166 = vpack.c.b16 %v1126, %v1125
        %v1167 = vpack.c.b16 %v1128, %v1127
        %v1168 = vpack.c.b16 %v1130, %v1129
        %v1169 = vpack.c.b16 %v1132, %v1131
        %v1170 = vpack.c.b16 %v1134, %v1133
        %v1171 = vpack.c.b16 %v1136, %v1135
        %v1172 = vpack.c.b16 %v1138, %v1137
        %v1173 = vpack.c.b16 %v1140, %v1139
        %v1174 = vpack.c.b16 %v1142, %v1141
        %1207 = vmatpush.bf16.msra.mxu0 %v1150
        %1208 = vmatpush.bf16.msra.mxu0 %v1149
        %1209 = vmatpush.bf16.msra.mxu0 %v1148
        %1210 = vmatpush.bf16.msra.mxu0 %v1147
        %1211 = vmatpush.bf16.msra.mxu0 %v1146
        %1212 = vmatpush.bf16.msra.mxu0 %v1145
        %1213 = vmatpush.bf16.msra.mxu0 %v1144
        %1214 = vmatpush.bf16.msra.mxu0 %v1143
        %1215 = vmatmul.bf16.gmra.mxu0 %v1007
        %v1216 = vpop.f32.mrf.mxu0
        %v1217 = vadd.f32 %v999, %v1216
        %v1218 = vpop.f32.mrf.mxu0
        %1219 = vdwg.mxu0
        %1220 = vmatpush.bf16.msra.mxu0 %v1158
        %1221 = vmatpush.bf16.msra.mxu0 %v1157
        %1222 = vmatpush.bf16.msra.mxu0 %v1156
        %1223 = vmatpush.bf16.msra.mxu0 %v1155
        %1224 = vmatpush.bf16.msra.mxu0 %v1154
        %1225 = vmatpush.bf16.msra.mxu0 %v1153
        %1226 = vmatpush.bf16.msra.mxu0 %v1152
        %1227 = vmatpush.bf16.msra.mxu0 %v1151
        %1228 = vmatmul.bf16.gmra.mxu0 %v1008
        %v1229 = vpop.f32.mrf.mxu0
        %v1230 = vadd.f32 %v1217, %v1229
        %v1231 = vpop.f32.mrf.mxu0
        %1232 = vdwg.mxu0
        %1233 = vmatpush.bf16.msra.mxu0 %v1166
        %1234 = vmatpush.bf16.msra.mxu0 %v1165
        %1235 = vmatpush.bf16.msra.mxu0 %v1164
        %1236 = vmatpush.bf16.msra.mxu0 %v1163
        %1237 = vmatpush.bf16.msra.mxu0 %v1162
        %1238 = vmatpush.bf16.msra.mxu0 %v1161
        %1239 = vmatpush.bf16.msra.mxu0 %v1160
        %1240 = vmatpush.bf16.msra.mxu0 %v1159
        %1241 = vmatmul.bf16.gmra.mxu0 %v1009
        %v1242 = vpop.f32.mrf.mxu0
        %v1243 = vadd.f32 %v1230, %v1242
        %v1244 = vpop.f32.mrf.mxu0
        %1245 = vdwg.mxu0
        %1246 = vmatpush.bf16.msra.mxu0 %v1174
        %1247 = vmatpush.bf16.msra.mxu0 %v1173
        %1248 = vmatpush.bf16.msra.mxu0 %v1172
        %1249 = vmatpush.bf16.msra.mxu0 %v1171
        %1250 = vmatpush.bf16.msra.mxu0 %v1170
        %1251 = vmatpush.bf16.msra.mxu0 %v1169
        %1252 = vmatpush.bf16.msra.mxu0 %v1168
        %1253 = vmatpush.bf16.msra.mxu0 %v1167
        %1254 = vmatmul.bf16.gmra.mxu0 %v1010
        %v1255 = vpop.f32.mrf.mxu0
        %v1256 = vadd.f32 %v1243, %v1255
        %v1257 = vpop.f32.mrf.mxu0
        %1258 = vdwg.mxu0
        %1259 = vst.msk [vmem:[%s294] sm:$0xff] %vm362, %v1256
        %s1260 = sand.u32 %s185, 1
        %s1261 = scalar_lea.sflag [#allocation4], %s1260
        %s1262 = sand.u32 %s185, 1
        %s1263 = smul.addr %s1262, 8
        %s1264 = scalar_lea.vmem [#allocation3], %s1263
        // Predicated region
        $region45: #{tpu_custom_call.1} parent=43 // pred_check
          %p1265 = pneg %p195
        $region46: #{tpu_custom_call.1} parent=43 // pred_check_branch
          %1267 = sbr.rel (%p1265) target = $region48
        $region47: #{tpu_custom_call.1} parent=43 // pred_region
          %1269 = vsyncadd %s1261, 0
          %s1270 = sadd.s32 %s25, %s24
          %s1271 = smul.addr %s1270, 8
          %s1272 = scalar_lea.hbm %s6, %s1271
          %s1274 = sshll.u32 %s1264, 4
          %s1275 = int_to_ptr.vmem [resolvable:$true] %s1274
          %s1276 = sshll.u32 %s1272, 4
          %s1277 = int_to_ptr.hbm [resolvable:$true] %s1276
          %1279 = dma.vmem_to_hbm [thread:$0]  %s1275, 128, %s1277, %s1261
        $region48: #{tpu_custom_call.1} parent=43 // pred_fallthru
          _
      $region44: #{tpu_custom_call.1} parent=5 // pred_fallthru
        _
      %p1280 = scmp.le.s32.totalorder 2, %s15
      // Predicated region
      $region49: #{tpu_custom_call.1} parent=5 // pred_check
        %p1281 = pneg %p1280
      $region50: #{tpu_custom_call.1} parent=5 // pred_check_branch
        %1283 = sbr.rel (%p1281) target = $region52
      $region51: #{tpu_custom_call.1} parent=5 // pred_region
        %s1284 = ssub.s32 %s15, 2
        // Predicated region
        $region53: #{tpu_custom_call.1} parent=51 // pred_check
          %p1285 = pneg %p201
        $region54: #{tpu_custom_call.1} parent=51 // pred_check_branch
          %1287 = sbr.rel (%p1285) target = $region56
        $region55: #{tpu_custom_call.1} parent=51 // pred_region
          %s1288 = sand.u32 %s186, 1
          %s1289 = scalar_lea.sflag [#allocation4], %s1288
          %s1290 = sand.u32 %s186, 1
          %s1291 = smul.addr %s1290, 8
          %s1292 = scalar_lea.vmem [#allocation3], %s1291
          %1294 = dma.done %s1289, 128
        $region56: #{tpu_custom_call.1} parent=51 // pred_fallthru
          _
      $region52: #{tpu_custom_call.1} parent=5 // pred_fallthru
        _
    $region6: #{tpu_custom_call.1} parent=1 // loop_footer
      %s19 = sadd.s32 1, %s15
    $region7: #{tpu_custom_call.1} parent=1 // loop_footer_branch
      %14 = sbr.rel target = $region3
    $region8: #{tpu_custom_call.1} parent=1 // loop_exit
      _
    %1295 = vsyncpa [#allocation4], 1
    %s1296 = scalar_lea.sflag [#allocation4], 1
    %1297 = vsyncpa %s1296, 1

</llo_original>
